<compile_context>
chip_gen: v7x
topology: tpu7x:2x2x1
jax: 0.10.0
libtpu: 0.0.40
codegen_flags: <defaults>
</compile_context>

<pallas_src>
import functools

import jax
import jax.numpy as jnp
from jax.experimental import pallas as pl
from jax.experimental.pallas import tpu as pltpu

LANE = 128          # TPU lane width: pad last dims to this for dense MXU / vst
_NEG_BIG = -1e30    # mask value for padded class lanes inside log_softmax


# ----------------------------------------------------------------------------
# Small padding helpers (all done once, outside the per-forward hot path)
# ----------------------------------------------------------------------------
def _round_up(v, m):
    return ((v + m - 1) // m) * m


def _pad2(a, rows, cols):
    r, c = a.shape
    return jnp.pad(a, ((0, rows - r), (0, cols - c)))


def _pad_bias(b, cols):
    return jnp.pad(b.reshape(1, -1), ((0, 0), (0, cols - b.shape[0])))


# ----------------------------------------------------------------------------
# Fused Pallas kernel: whole OurModel_share forward (eval mode, fusion='cat')
# ----------------------------------------------------------------------------
def _fused_forward_kernel(*refs, n, num_classes, num_hidden):
    if num_hidden > 0:
        (a_stack_ref, a_blk_ref, x_ref,
         w1_ref, b1_ref, wh_ref, bh_ref,
         w2_ref, b2_ref, wfc1_ref, wfc2_ref, bfc_ref,
         out_ref, xstack_ref) = refs
    else:
        (a_stack_ref, a_blk_ref, x_ref,
         w1_ref, b1_ref,
         w2_ref, b2_ref, wfc1_ref, wfc2_ref, bfc_ref,
         out_ref, xstack_ref) = refs
        wh_ref = bh_ref = None

    f32 = jnp.float32
    bf16 = jnp.bfloat16

    a_blk = a_blk_ref[...].astype(bf16)                     # (2N, 2N) blockdiag

    # ---- Layer 1: shared weights + shared input -> X @ W computed ONCE,
    #      both branches produced by a single stacked-A matmul.
    h = jnp.dot(x_ref[...].astype(bf16), w1_ref[...].astype(bf16),
                preferred_element_type=f32)                  # (N, Hp)
    xs = jnp.dot(a_stack_ref[...].astype(bf16), h.astype(bf16),
                 preferred_element_type=f32) + b1_ref[...]   # (2N, Hp)
    xs = jnp.maximum(xs, 0.0)        # ReLU; dropout is identity (eval mode)

    # ---- Hidden GCN layers (weights shared across both branches)
    for layer in range(num_hidden):
        hh = jnp.dot(xs.astype(bf16), wh_ref[layer].astype(bf16),
                     preferred_element_type=f32)             # (2N, Hp)
        xs = jnp.dot(a_blk, hh.astype(bf16),
                     preferred_element_type=f32) + bh_ref[layer]
        xs = jnp.maximum(xs, 0.0)

    # ---- Output GCN layer (conv2_1 shared, no activation)
    h2 = jnp.dot(xs.astype(bf16), w2_ref[...].astype(bf16),
                 preferred_element_type=f32)                 # (2N, Cp)
    xs = jnp.dot(a_blk, h2.astype(bf16),
                 preferred_element_type=f32) + b2_ref[...]   # (2N, Cp)
    xstack_ref[...] = xs.astype(xstack_ref.dtype)            # [x_1 ; x_2]

    # ---- fusion == 'cat':  fc(cat(x1, x2)) then log_softmax over classes.
    #      cat + Linear rewritten as x1 @ W1fc + x2 @ W2fc + b.
    x1 = xs[:n, :]
    x2 = xs[n:, :]
    y = (jnp.dot(x1.astype(bf16), wfc1_ref[...].astype(bf16),
                 preferred_element_type=f32)
         + jnp.dot(x2.astype(bf16), wfc2_ref[...].astype(bf16),
                   preferred_element_type=f32)
         + bfc_ref[...])                                     # (N, Cp)

    # log_softmax over the first `num_classes` lanes only (rest is padding).
    lane = jax.lax.broadcasted_iota(jnp.int32, y.shape, 1)
    valid = lane < num_classes
    y = jnp.where(valid, y, _NEG_BIG)
    m = jnp.max(y, axis=-1, keepdims=True)
    s = y - m
    e = jnp.where(valid, jnp.exp(s), 0.0)
    lse = jnp.log(jnp.sum(e, axis=-1, keepdims=True))
    out_ref[...] = jnp.where(valid, s - lse, 0.0).astype(out_ref.dtype)


def fused_forward(a_stack, a_blk, x_pad, pp, *, n, num_classes, num_hidden):
    """Single pallas_call for the whole forward; returns (out, x_1, x_2)."""
    c_pad = pp["w2"].shape[1]

    inputs = [a_stack, a_blk, x_pad, pp["w1"], pp["b1"]]
    if num_hidden > 0:
        inputs += [pp["wh"], pp["bh"]]
    inputs += [pp["w2"], pp["b2"], pp["wfc1"], pp["wfc2"], pp["bfc"]]

    def vmem():
        return pl.BlockSpec(memory_space=pltpu.MemorySpace.VMEM)

    kern = functools.partial(_fused_forward_kernel, n=n,
                             num_classes=num_classes, num_hidden=num_hidden)

    # No grid: everything (weights, adjacencies, intermediates) stays resident
    # in VMEM for the single invocation — no degenerate 1-step pipeline.
    # TODO(synk): for large N, tile the A matmuls over rows with a BlockSpec
    # grid (v7x has only 64 MiB VMEM) and split the two branches across v7x's
    # two TensorCores via a "parallel" grid axis / core_map.
    out_pad, xstack = pl.pallas_call(
        kern,
        out_shape=(jax.ShapeDtypeStruct((n, c_pad), jnp.float32),
                   jax.ShapeDtypeStruct((2 * n, c_pad), jnp.float32)),
        in_specs=[vmem() for _ in inputs],
        out_specs=(vmem(), vmem()),
    )(*inputs)

    out = out_pad[:, :num_classes]
    x_1 = xstack[:n, :num_classes]
    x_2 = xstack[n:, :num_classes]
    return out, x_1, x_2


# ----------------------------------------------------------------------------
# Parameters (shared between in-/out-edge paths, as in OurModel_share.forward
# which uses conv1_1 / convs_1 / conv2_1 for BOTH paths)
# ----------------------------------------------------------------------------
def glorot(key, shape):
    fan_in, fan_out = shape[0], shape[1]
    limit = jnp.sqrt(6.0 / (fan_in + fan_out))
    return jax.random.uniform(key, shape, jnp.float32, -limit, limit)


def init_params(key, num_features, hidden, num_classes, num_layer):
    n_hidden = max(num_layer - 2, 0)
    ks = jax.random.split(key, 3 + max(n_hidden, 1))
    params = {
        "conv1_1_w": glorot(ks[0], (num_features, hidden)),
        "conv1_1_b": jnp.zeros((hidden,), jnp.float32),
        "convs_1": [],
        "conv2_1_w": glorot(ks[1], (hidden, num_classes)),
        "conv2_1_b": jnp.zeros((num_classes,), jnp.float32),
        "fc_w": glorot(ks[2], (num_classes, num_classes * 2)),
        "fc_b": jnp.zeros((num_classes,), jnp.float32),
    }
    for layer in range(n_hidden):
        params["convs_1"].append(
            (glorot(ks[3 + layer], (hidden, hidden)),
             jnp.zeros((hidden,), jnp.float32)))
    return params


def prepare_params(params, num_features, hidden, num_classes):
    """Pad every lane dim to 128 and pre-split/transposes the fc weight (once)."""
    f_pad = _round_up(num_features, LANE)
    h_pad = _round_up(hidden, LANE)
    c_pad = _round_up(num_classes, LANE)
    pp = {
        "w1": _pad2(params["conv1_1_w"], f_pad, h_pad),
        "b1": _pad_bias(params["conv1_1_b"], h_pad),
        "w2": _pad2(params["conv2_1_w"], h_pad, c_pad),
        "b2": _pad_bias(params["conv2_1_b"], c_pad),
    }
    num_hidden = len(params["convs_1"])
    if num_hidden > 0:
        pp["wh"] = jnp.stack([_pad2(w, h_pad, h_pad)
                              for w, _ in params["convs_1"]])
        pp["bh"] = jnp.stack([_pad_bias(b, h_pad)
                              for _, b in params["convs_1"]])
    # PyTorch Linear: y = cat(x1, x2) @ W.T + b == x1 @ Wt[:C] + x2 @ Wt[C:] + b
    wt = params["fc_w"].T                          # (2C, C), done once
    c = num_classes
    pp["wfc1"] = _pad2(wt[:c, :], c_pad, c_pad)
    pp["wfc2"] = _pad2(wt[c:, :], c_pad, c_pad)
    pp["bfc"] = _pad_bias(params["fc_b"], c_pad)
    return pp, num_hidden


# ----------------------------------------------------------------------------
# Graph preparation: dense GCN normalization + stacked / block-diagonal forms
# ----------------------------------------------------------------------------
def gcn_norm(adj):
    """Dense GCN normalization: D^-1/2 (A + I) D^-1/2 (with self loops)."""
    n = adj.shape[0]
    a_hat = adj + jnp.eye(n, dtype=adj.dtype)
    deg = a_hat.sum(axis=1)
    d_inv_sqrt = jnp.where(deg > 0, 1.0 / jnp.sqrt(deg), 0.0)
    return d_inv_sqrt[:, None] * a_hat * d_inv_sqrt[None, :]


def prepare_graph(adj1, adj2):
    a1 = gcn_norm(adj1)
    a2 = gcn_norm(adj2)
    a_stack = jnp.concatenate([a1, a2], axis=0)              # (2N, N)
    z = jnp.zeros_like(a1)
    a_blk = jnp.concatenate(
        [jnp.concatenate([a1, z], axis=1),
         jnp.concatenate([z, a2], axis=1)], axis=0)          # (2N, 2N)
    return a1, a2, a_stack, a_blk


# ----------------------------------------------------------------------------
# Model forward (jit-able): pad X, run the single fused kernel, slice outputs
# ----------------------------------------------------------------------------
def our_model_share_forward(pp, x, a_stack, a_blk, *, num_classes, num_hidden):
    n, f = x.shape
    f_pad = pp["w1"].shape[0]
    x_pad = jnp.pad(x, ((0, 0), (0, f_pad - f)))
    return fused_forward(a_stack, a_blk, x_pad, pp,
                         n=n, num_classes=num_classes, num_hidden=num_hidden)


# ----------------------------------------------------------------------------
# Pure-JAX reference (float32, unfused) for correctness checking
# ----------------------------------------------------------------------------
def reference_forward(params, x, a1, a2):
    def gcn(a, xx, w, b, relu):
        y = a @ (xx @ w) + b
        return jnp.maximum(y, 0.0) if relu else y

    x1 = gcn(a1, x, params["conv1_1_w"], params["conv1_1_b"], True)
    x2 = gcn(a2, x, params["conv1_1_w"], params["conv1_1_b"], True)
    for w, b in params["convs_1"]:
        x1 = gcn(a1, x1, w, b, True)
        x2 = gcn(a2, x2, w, b, True)
    x1 = gcn(a1, x1, params["conv2_1_w"], params["conv2_1_b"], False)
    x2 = gcn(a2, x2, params["conv2_1_w"], params["conv2_1_b"], False)
    y = jnp.concatenate([x1, x2], axis=1) @ params["fc_w"].T + params["fc_b"]
    return jax.nn.log_softmax(y, axis=1), x1, x2


# ----------------------------------------------------------------------------
# Demo
# ----------------------------------------------------------------------------
if __name__ == "__main__":
    N = 64            # number of graph nodes (multiple of 8)
    NUM_FEATURES = 16
    HIDDEN = 32
    NUM_CLASSES = 8
    NUM_LAYER = 3     # one hidden GCN block (args.num_layer = 3)

    key = jax.random.PRNGKey(0)
    k_x, k_adj, k_p = jax.random.split(key, 3)

    # Node features.
    x = jax.random.normal(k_x, (N, NUM_FEATURES), jnp.float32)

    # Synthetic directed graph: dense binary adjacency; edge_index2 is the
    # reversed edge set (transpose), as used by the directed-graph model.
    adj_logits = jax.random.uniform(k_adj, (N, N))
    adj = (adj_logits < 0.1).astype(jnp.float32)
    adj = adj * (1.0 - jnp.eye(N, dtype=jnp.float32))
    a1, a2, a_stack, a_blk = prepare_graph(adj, adj.T)

    params = init_params(k_p, NUM_FEATURES, HIDDEN, NUM_CLASSES, NUM_LAYER)
    pp, num_hidden = prepare_params(params, NUM_FEATURES, HIDDEN, NUM_CLASSES)

    fwd = jax.jit(functools.partial(our_model_share_forward,
                                    num_classes=NUM_CLASSES,
                                    num_hidden=num_hidden))
    out, x_1, x_2 = fwd(pp, x, a_stack, a_blk)
    jax.block_until_ready((out, x_1, x_2))

    assert out.shape == (N, NUM_CLASSES)
    assert x_1.shape == (N, NUM_CLASSES)
    assert x_2.shape == (N, NUM_CLASSES)
    # log_softmax rows should (exp-)sum to ~1
    assert jnp.allclose(jnp.sum(jnp.exp(out), axis=1), 1.0, atol=1e-4)

    # Compare against the unfused float32 reference (bf16 MXU inputs -> loose
    # absolute tolerance).
    out_r, x1_r, x2_r = reference_forward(params, x, a1, a2)
    assert float(jnp.max(jnp.abs(out - out_r))) < 5e-2
    assert float(jnp.max(jnp.abs(x_1 - x1_r))) < 5e-2
    assert float(jnp.max(jnp.abs(x_2 - x2_r))) < 5e-2

    print("KERNEL_OK")
</pallas_src>

<mosaic_0001>
module attributes {stable_mosaic.version = 11 : i64} {
  func.func @_fused_forward_kernel(%arg0: memref<128x64xf32, #tpu.memory_space<vmem>>, %arg1: memref<128x128xf32, #tpu.memory_space<vmem>>, %arg2: memref<64x128xf32, #tpu.memory_space<vmem>>, %arg3: memref<128x128xf32, #tpu.memory_space<vmem>>, %arg4: memref<1x128xf32, #tpu.memory_space<vmem>>, %arg5: memref<1x128x128xf32, #tpu.memory_space<vmem>>, %arg6: memref<1x1x128xf32, #tpu.memory_space<vmem>>, %arg7: memref<128x128xf32, #tpu.memory_space<vmem>>, %arg8: memref<1x128xf32, #tpu.memory_space<vmem>>, %arg9: memref<128x128xf32, #tpu.memory_space<vmem>>, %arg10: memref<128x128xf32, #tpu.memory_space<vmem>>, %arg11: memref<1x128xf32, #tpu.memory_space<vmem>>, %arg12: memref<64x128xf32, #tpu.memory_space<vmem>>, %arg13: memref<128x128xf32, #tpu.memory_space<vmem>>) attributes {dimension_semantics = [], scalar_prefetch = 0 : i64, scratch_operands = 0 : i64, tpu.core_type = #tpu.core_type<tc>} {
    %c0 = arith.constant 0 : index
    %c0_0 = arith.constant 0 : index
    %0 = vector.load %arg1[%c0, %c0_0] : memref<128x128xf32, #tpu.memory_space<vmem>>, vector<128x128xf32>
    %1 = arith.truncf %0 : vector<128x128xf32> to vector<128x128xbf16>
    %c0_1 = arith.constant 0 : index
    %c0_2 = arith.constant 0 : index
    %2 = vector.load %arg2[%c0_1, %c0_2] : memref<64x128xf32, #tpu.memory_space<vmem>>, vector<64x128xf32>
    %3 = arith.truncf %2 : vector<64x128xf32> to vector<64x128xbf16>
    %c0_3 = arith.constant 0 : index
    %c0_4 = arith.constant 0 : index
    %4 = vector.load %arg3[%c0_3, %c0_4] : memref<128x128xf32, #tpu.memory_space<vmem>>, vector<128x128xf32>
    %5 = arith.truncf %4 : vector<128x128xf32> to vector<128x128xbf16>
    %cst = arith.constant dense<0.000000e+00> : vector<64x128xf32>
    %6 = tpu.matmul %3, %5, %cst {dimension_numbers = #tpu.dot_dimension_numbers<[1], [0], [0], [1], [0, 0, 1, 1], [], []>} : vector<64x128xbf16>, vector<128x128xbf16>, vector<64x128xf32> -> vector<64x128xf32>
    %c0_5 = arith.constant 0 : index
    %c0_6 = arith.constant 0 : index
    %7 = vector.load %arg0[%c0_5, %c0_6] : memref<128x64xf32, #tpu.memory_space<vmem>>, vector<128x64xf32>
    %8 = arith.truncf %7 : vector<128x64xf32> to vector<128x64xbf16>
    %9 = arith.truncf %6 : vector<64x128xf32> to vector<64x128xbf16>
    %cst_7 = arith.constant dense<0.000000e+00> : vector<128x128xf32>
    %10 = tpu.matmul %8, %9, %cst_7 {dimension_numbers = #tpu.dot_dimension_numbers<[1], [0], [0], [1], [0, 0, 1, 1], [], []>} : vector<128x64xbf16>, vector<64x128xbf16>, vector<128x128xf32> -> vector<128x128xf32>
    %c0_8 = arith.constant 0 : index
    %c0_9 = arith.constant 0 : index
    %11 = vector.load %arg4[%c0_8, %c0_9] : memref<1x128xf32, #tpu.memory_space<vmem>>, vector<1x128xf32>
    %12 = vector.broadcast %11 : vector<1x128xf32> to vector<128x128xf32>
    %13 = arith.addf %10, %12 : vector<128x128xf32>
    %cst_10 = arith.constant 0.000000e+00 : f32
    %14 = vector.broadcast %cst_10 : f32 to vector<128x128xf32>
    %15 = arith.maximumf %13, %14 : vector<128x128xf32>
    %16 = arith.truncf %15 : vector<128x128xf32> to vector<128x128xbf16>
    %c0_11 = arith.constant 0 : index
    %c0_12 = arith.constant 0 : index
    %c0_13 = arith.constant 0 : index
    %17 = vector.load %arg5[%c0_11, %c0_12, %c0_13] : memref<1x128x128xf32, #tpu.memory_space<vmem>>, vector<1x128x128xf32>
    %18 = vector.shape_cast %17 : vector<1x128x128xf32> to vector<128x128xf32>
    %19 = arith.truncf %18 : vector<128x128xf32> to vector<128x128xbf16>
    %cst_14 = arith.constant dense<0.000000e+00> : vector<128x128xf32>
    %20 = tpu.matmul %16, %19, %cst_14 {dimension_numbers = #tpu.dot_dimension_numbers<[1], [0], [0], [1], [0, 0, 1, 1], [], []>} : vector<128x128xbf16>, vector<128x128xbf16>, vector<128x128xf32> -> vector<128x128xf32>
    %21 = arith.truncf %20 : vector<128x128xf32> to vector<128x128xbf16>
    %cst_15 = arith.constant dense<0.000000e+00> : vector<128x128xf32>
    %22 = tpu.matmul %1, %21, %cst_15 {dimension_numbers = #tpu.dot_dimension_numbers<[1], [0], [0], [1], [0, 0, 1, 1], [], []>} : vector<128x128xbf16>, vector<128x128xbf16>, vector<128x128xf32> -> vector<128x128xf32>
    %c0_16 = arith.constant 0 : index
    %c0_17 = arith.constant 0 : index
    %c0_18 = arith.constant 0 : index
    %23 = vector.load %arg6[%c0_16, %c0_17, %c0_18] : memref<1x1x128xf32, #tpu.memory_space<vmem>>, vector<1x1x128xf32>
    %24 = vector.shape_cast %23 : vector<1x1x128xf32> to vector<1x128xf32>
    %25 = vector.broadcast %24 : vector<1x128xf32> to vector<128x128xf32>
    %26 = arith.addf %22, %25 : vector<128x128xf32>
    %cst_19 = arith.constant 0.000000e+00 : f32
    %27 = vector.broadcast %cst_19 : f32 to vector<128x128xf32>
    %28 = arith.maximumf %26, %27 : vector<128x128xf32>
    %29 = arith.truncf %28 : vector<128x128xf32> to vector<128x128xbf16>
    %c0_20 = arith.constant 0 : index
    %c0_21 = arith.constant 0 : index
    %30 = vector.load %arg7[%c0_20, %c0_21] : memref<128x128xf32, #tpu.memory_space<vmem>>, vector<128x128xf32>
    %31 = arith.truncf %30 : vector<128x128xf32> to vector<128x128xbf16>
    %cst_22 = arith.constant dense<0.000000e+00> : vector<128x128xf32>
    %32 = tpu.matmul %29, %31, %cst_22 {dimension_numbers = #tpu.dot_dimension_numbers<[1], [0], [0], [1], [0, 0, 1, 1], [], []>} : vector<128x128xbf16>, vector<128x128xbf16>, vector<128x128xf32> -> vector<128x128xf32>
    %33 = arith.truncf %32 : vector<128x128xf32> to vector<128x128xbf16>
    %cst_23 = arith.constant dense<0.000000e+00> : vector<128x128xf32>
    %34 = tpu.matmul %1, %33, %cst_23 {dimension_numbers = #tpu.dot_dimension_numbers<[1], [0], [0], [1], [0, 0, 1, 1], [], []>} : vector<128x128xbf16>, vector<128x128xbf16>, vector<128x128xf32> -> vector<128x128xf32>
    %c0_24 = arith.constant 0 : index
    %c0_25 = arith.constant 0 : index
    %35 = vector.load %arg8[%c0_24, %c0_25] : memref<1x128xf32, #tpu.memory_space<vmem>>, vector<1x128xf32>
    %36 = vector.broadcast %35 : vector<1x128xf32> to vector<128x128xf32>
    %37 = arith.addf %34, %36 : vector<128x128xf32>
    %c0_26 = arith.constant 0 : index
    %c0_27 = arith.constant 0 : index
    %38 = vector.load %arg13[%c0_26, %c0_27] : memref<128x128xf32, #tpu.memory_space<vmem>>, vector<128x128xf32>
    tpu.vector_store %arg13[%c0_26, %c0_27], %37 {strides = array<i32>} : memref<128x128xf32, #tpu.memory_space<vmem>>, vector<128x128xf32>,
    %39 = vector.extract_strided_slice %37 {offsets = [0, 0], sizes = [64, 128], strides = [1, 1]} : vector<128x128xf32> to vector<64x128xf32>
    %40 = vector.extract_strided_slice %37 {offsets = [64, 0], sizes = [64, 128], strides = [1, 1]} : vector<128x128xf32> to vector<64x128xf32>
    %41 = arith.truncf %39 : vector<64x128xf32> to vector<64x128xbf16>
    %c0_28 = arith.constant 0 : index
    %c0_29 = arith.constant 0 : index
    %42 = vector.load %arg9[%c0_28, %c0_29] : memref<128x128xf32, #tpu.memory_space<vmem>>, vector<128x128xf32>
    %43 = arith.truncf %42 : vector<128x128xf32> to vector<128x128xbf16>
    %cst_30 = arith.constant dense<0.000000e+00> : vector<64x128xf32>
    %44 = tpu.matmul %41, %43, %cst_30 {dimension_numbers = #tpu.dot_dimension_numbers<[1], [0], [0], [1], [0, 0, 1, 1], [], []>} : vector<64x128xbf16>, vector<128x128xbf16>, vector<64x128xf32> -> vector<64x128xf32>
    %45 = arith.truncf %40 : vector<64x128xf32> to vector<64x128xbf16>
    %c0_31 = arith.constant 0 : index
    %c0_32 = arith.constant 0 : index
    %46 = vector.load %arg10[%c0_31, %c0_32] : memref<128x128xf32, #tpu.memory_space<vmem>>, vector<128x128xf32>
    %47 = arith.truncf %46 : vector<128x128xf32> to vector<128x128xbf16>
    %cst_33 = arith.constant dense<0.000000e+00> : vector<64x128xf32>
    %48 = tpu.matmul %45, %47, %cst_33 {dimension_numbers = #tpu.dot_dimension_numbers<[1], [0], [0], [1], [0, 0, 1, 1], [], []>} : vector<64x128xbf16>, vector<128x128xbf16>, vector<64x128xf32> -> vector<64x128xf32>
    %49 = arith.addf %44, %48 : vector<64x128xf32>
    %c0_34 = arith.constant 0 : index
    %c0_35 = arith.constant 0 : index
    %50 = vector.load %arg11[%c0_34, %c0_35] : memref<1x128xf32, #tpu.memory_space<vmem>>, vector<1x128xf32>
    %51 = vector.broadcast %50 : vector<1x128xf32> to vector<64x128xf32>
    %52 = arith.addf %49, %51 : vector<64x128xf32>
    %53 = tpu.iota {dimensions = array<i32: 1>} : vector<64x128xi32>
    %c8_i32 = arith.constant 8 : i32
    %54 = vector.broadcast %c8_i32 : i32 to vector<64x128xi32>
    %55 = arith.cmpi slt, %53, %54 : vector<64x128xi32>
    %cst_36 = arith.constant -1.000000e+30 : f32
    %56 = vector.broadcast %cst_36 : f32 to vector<64x128xf32>
    %57 = arith.select %55, %52, %56 : vector<64x128xi1>, vector<64x128xf32>
    %cst_37 = arith.constant dense<0xFF800000> : vector<64xf32>
    %58 = vector.multi_reduction <maximumf>, %57, %cst_37 [1] : vector<64x128xf32> to vector<64xf32>
    %59 = vector.shape_cast %58 : vector<64xf32> to vector<64x1xf32>
    %60 = vector.broadcast %59 : vector<64x1xf32> to vector<64x128xf32>
    %61 = arith.subf %57, %60 : vector<64x128xf32>
    %62 = math.exp %61 : vector<64x128xf32>
    %cst_38 = arith.constant 0.000000e+00 : f32
    %63 = vector.broadcast %cst_38 : f32 to vector<64x128xf32>
    %64 = arith.select %55, %62, %63 : vector<64x128xi1>, vector<64x128xf32>
    %cst_39 = arith.constant dense<0.000000e+00> : vector<64xf32>
    %65 = vector.multi_reduction <add>, %64, %cst_39 [1] : vector<64x128xf32> to vector<64xf32>
    %66 = vector.shape_cast %65 : vector<64xf32> to vector<64x1xf32>
    %67 = math.log %66 : vector<64x1xf32>
    %68 = vector.broadcast %67 : vector<64x1xf32> to vector<64x128xf32>
    %69 = arith.subf %61, %68 : vector<64x128xf32>
    %cst_40 = arith.constant 0.000000e+00 : f32
    %70 = vector.broadcast %cst_40 : f32 to vector<64x128xf32>
    %71 = arith.select %55, %69, %70 : vector<64x128xi1>, vector<64x128xf32>
    %c0_41 = arith.constant 0 : index
    %c0_42 = arith.constant 0 : index
    %72 = vector.load %arg12[%c0_41, %c0_42] : memref<64x128xf32, #tpu.memory_space<vmem>>, vector<64x128xf32>
    tpu.vector_store %arg12[%c0_41, %c0_42], %71 {strides = array<i32>} : memref<64x128xf32, #tpu.memory_space<vmem>>, vector<64x128xf32>,
    return
  }
}

</mosaic_0001>

<llo_original>
// kernel: our_model_share_forward.1
$region0: #{our_model_share_forward.1}
  #allocation0 [shape = 'u32[]', space=smem, size = 0x4, offset = 0x4, fixed_abs, tag = 'smem constant byte address 0x4 - core index']
  #allocation1 [shape = 'u32[144,128]{1,0:T(1,128)}', space=vmem, size = 0x12000, scoped, tag = 'internal scratch']
  %s0 = inlined_call_operand.vmem [shape: f32[128,64], index: 0, kind: input, shape index: {}]
  %s1 = inlined_call_operand.vmem [shape: f32[128,128], index: 1, kind: input, shape index: {}]
  %s2 = inlined_call_operand.vmem [shape: f32[64,128], index: 2, kind: input, shape index: {}]
  %s3 = inlined_call_operand.vmem [shape: f32[128,128], index: 3, kind: input, shape index: {}]
  %s4 = inlined_call_operand.vmem [shape: f32[1,128], index: 4, kind: input, shape index: {}]
  %s5 = inlined_call_operand.vmem [shape: f32[1,128,128], index: 5, kind: input, shape index: {}]
  %s6 = inlined_call_operand.vmem [shape: f32[1,1,128], index: 6, kind: input, shape index: {}]
  %s7 = inlined_call_operand.hbm [shape: f32[128,128], index: 7, kind: input, shape index: {}]
  %s8 = inlined_call_operand.vmem [shape: f32[1,128], index: 8, kind: input, shape index: {}]
  %s9 = inlined_call_operand.hbm [shape: f32[128,128], index: 9, kind: input, shape index: {}]
  %s10 = inlined_call_operand.hbm [shape: f32[128,128], index: 10, kind: input, shape index: {}]
  %s11 = inlined_call_operand.vmem [shape: f32[1,128], index: 11, kind: input, shape index: {}]
  %s12 = inlined_call_operand.vmem [shape: f32[64,128], index: 12, kind: output, shape index: {0}]
  %s13 = inlined_call_operand.vmem [shape: f32[128,128], index: 13, kind: output, shape index: {1}]
  %14 = xla_tuple %s12, %s13
  %s15 = sld [smem:[#allocation0]]
  $region78: #{our_model_share_forward.1} parent=0
    _
  %s17 = ssub.s32 1, %s15
  %s18 = scalar_select 0, %s17, %s15
  $region1: #{our_model_share_forward.1} parent=0
    #allocation2 [shape = 'u8[65536]{0}', space=vmem, size = 0x10000, scoped, tag = 'input window, operand 7, single buffered']
    #allocation3 [shape = 's32[1]{0}', space=sflag, size = 0x4, scoped, tag = 'scoped memory for our_model_share_forward.1']
    #allocation4 [shape = 'u8[65536]{0}', space=vmem, size = 0x10000, scoped, tag = 'input window, operand 9, single buffered']
    #allocation5 [shape = 's32[1]{0}', space=sflag, size = 0x4, scoped, tag = 'scoped memory for our_model_share_forward.1']
    #allocation6 [shape = 'u8[65536]{0}', space=vmem, size = 0x10000, scoped, tag = 'input window, operand 10, single buffered']
    %19 = vsyncpa [#allocation3], 0
    %20 = vsyncpa [#allocation5], 0
    // Predicated region
    $region2: #{our_model_share_forward.1} parent=1 // pred_check
      _
    $region3: #{our_model_share_forward.1} parent=1 // pred_check_branch
      %22 = sbr.rel (0) target = $region5
    $region4: #{our_model_share_forward.1} parent=1 // pred_region
      _
    $region5: #{our_model_share_forward.1} parent=1 // pred_fallthru
      _
    // Predicated region
    $region6: #{our_model_share_forward.1} parent=1 // pred_check
      _
    $region7: #{our_model_share_forward.1} parent=1 // pred_check_branch
      %24 = sbr.rel (0) target = $region9
    $region8: #{our_model_share_forward.1} parent=1 // pred_region
      _
    $region9: #{our_model_share_forward.1} parent=1 // pred_fallthru
      _
    // Predicated region
    $region10: #{our_model_share_forward.1} parent=1 // pred_check
      _
    $region11: #{our_model_share_forward.1} parent=1 // pred_check_branch
      %26 = sbr.rel (0) target = $region13
    $region12: #{our_model_share_forward.1} parent=1 // pred_region
      _
    $region13: #{our_model_share_forward.1} parent=1 // pred_fallthru
      _
    // Predicated region
    $region14: #{our_model_share_forward.1} parent=1 // pred_check
      _
    $region15: #{our_model_share_forward.1} parent=1 // pred_check_branch
      %28 = sbr.rel (0) target = $region17
    $region16: #{our_model_share_forward.1} parent=1 // pred_region
      _
    $region17: #{our_model_share_forward.1} parent=1 // pred_fallthru
      _
    // Predicated region
    $region18: #{our_model_share_forward.1} parent=1 // pred_check
      _
    $region19: #{our_model_share_forward.1} parent=1 // pred_check_branch
      %30 = sbr.rel (0) target = $region21
    $region20: #{our_model_share_forward.1} parent=1 // pred_region
      _
    $region21: #{our_model_share_forward.1} parent=1 // pred_fallthru
      _
    // Predicated region
    $region22: #{our_model_share_forward.1} parent=1 // pred_check
      _
    $region23: #{our_model_share_forward.1} parent=1 // pred_check_branch
      %32 = sbr.rel (0) target = $region25
    $region24: #{our_model_share_forward.1} parent=1 // pred_region
      _
    $region25: #{our_model_share_forward.1} parent=1 // pred_fallthru
      _
    // Predicated region
    $region26: #{our_model_share_forward.1} parent=1 // pred_check
      _
    $region27: #{our_model_share_forward.1} parent=1 // pred_check_branch
      %34 = sbr.rel (0) target = $region29
    $region28: #{our_model_share_forward.1} parent=1 // pred_region
      _
    $region29: #{our_model_share_forward.1} parent=1 // pred_fallthru
      _
    // Predicated region
    $region30: #{our_model_share_forward.1} parent=1 // pred_check
      _
    $region31: #{our_model_share_forward.1} parent=1 // pred_check_branch
      %36 = sbr.rel (0) target = $region33
    $region32: #{our_model_share_forward.1} parent=1 // pred_region
      %s38 = ssub.s32 2048, 2048
      %39 = vsyncadd [#allocation3], %s38
      %s40 = sshll.u32 [#allocation2], 4
      %s41 = int_to_ptr.vmem [resolvable:$true] %s40
      %46 = dma.hbm_to_vmem [thread:$0]  %s7, 2048, %s41, [#allocation3], 128, 128, 8
    $region33: #{our_model_share_forward.1} parent=1 // pred_fallthru
      _
    // Predicated region
    $region34: #{our_model_share_forward.1} parent=1 // pred_check
      _
    $region35: #{our_model_share_forward.1} parent=1 // pred_check_branch
      %48 = sbr.rel (0) target = $region37
    $region36: #{our_model_share_forward.1} parent=1 // pred_region
      _
    $region37: #{our_model_share_forward.1} parent=1 // pred_fallthru
      _
    // Predicated region
    $region38: #{our_model_share_forward.1} parent=1 // pred_check
      _
    $region39: #{our_model_share_forward.1} parent=1 // pred_check_branch
      %50 = sbr.rel (0) target = $region41
    $region40: #{our_model_share_forward.1} parent=1 // pred_region
      %s52 = ssub.s32 2048, 2048
      %53 = vsyncadd [#allocation5], %s52
      %s54 = sshll.u32 [#allocation4], 4
      %s55 = int_to_ptr.vmem [resolvable:$true] %s54
      %60 = dma.hbm_to_vmem [thread:$0]  %s9, 2048, %s55, [#allocation5], 128, 128, 8
    $region41: #{our_model_share_forward.1} parent=1 // pred_fallthru
      _
    // Predicated region
    $region42: #{our_model_share_forward.1} parent=1 // pred_check
      _
    $region43: #{our_model_share_forward.1} parent=1 // pred_check_branch
      %62 = sbr.rel (0) target = $region45
    $region44: #{our_model_share_forward.1} parent=1 // pred_region
      %s64 = ssub.s32 2048, 2048
      %65 = vsyncadd [#allocation5], %s64
      %s66 = sshll.u32 [#allocation6], 4
      %s67 = int_to_ptr.vmem [resolvable:$true] %s66
      %72 = dma.hbm_to_vmem [thread:$0]  %s10, 2048, %s67, [#allocation5], 128, 128, 8
    $region45: #{our_model_share_forward.1} parent=1 // pred_fallthru
      _
    // Predicated region
    $region46: #{our_model_share_forward.1} parent=1 // pred_check
      _
    $region47: #{our_model_share_forward.1} parent=1 // pred_check_branch
      %74 = sbr.rel (0) target = $region49
    $region48: #{our_model_share_forward.1} parent=1 // pred_region
      _
    $region49: #{our_model_share_forward.1} parent=1 // pred_fallthru
      _
    // Predicated region
    $region50: #{our_model_share_forward.1} parent=1 // pred_check
      _
    $region51: #{our_model_share_forward.1} parent=1 // pred_check_branch
      %76 = sbr.rel (0) target = $region53
    $region52: #{our_model_share_forward.1} parent=1 // pred_region
      %77 = dma.done [#allocation3], 2048
    $region53: #{our_model_share_forward.1} parent=1 // pred_fallthru
      _
    // Predicated region
    $region54: #{our_model_share_forward.1} parent=1 // pred_check
      _
    $region55: #{our_model_share_forward.1} parent=1 // pred_check_branch
      %79 = sbr.rel (0) target = $region57
    $region56: #{our_model_share_forward.1} parent=1 // pred_region
      %80 = dma.done [#allocation5], 2048
    $region57: #{our_model_share_forward.1} parent=1 // pred_fallthru
      _
    // Predicated region
    $region58: #{our_model_share_forward.1} parent=1 // pred_check
      _
    $region59: #{our_model_share_forward.1} parent=1 // pred_check_branch
      %82 = sbr.rel (0) target = $region61
    $region60: #{our_model_share_forward.1} parent=1 // pred_region
      %83 = dma.done [#allocation5], 2048
    $region61: #{our_model_share_forward.1} parent=1 // pred_fallthru
      _
    %v85 = vld [vmem:[%s1] sm:$0xff]
    %v86 = vld [vmem:[%s1 + $0x8] sm:$0xff]
    %v87 = vld [vmem:[%s1 + $0x10] sm:$0xff]
    %v88 = vld [vmem:[%s1 + $0x18] sm:$0xff]
    %v89 = vld [vmem:[%s1 + $0x20] sm:$0xff]
    %v90 = vld [vmem:[%s1 + $0x28] sm:$0xff]
    %v91 = vld [vmem:[%s1 + $0x30] sm:$0xff]
    %v92 = vld [vmem:[%s1 + $0x38] sm:$0xff]
    %v93 = vld [vmem:[%s1 + $0x40] sm:$0xff]
    %v94 = vld [vmem:[%s1 + $0x48] sm:$0xff]
    %v95 = vld [vmem:[%s1 + $0x50] sm:$0xff]
    %v96 = vld [vmem:[%s1 + $0x58] sm:$0xff]
    %v97 = vld [vmem:[%s1 + $0x60] sm:$0xff]
    %v98 = vld [vmem:[%s1 + $0x68] sm:$0xff]
    %v99 = vld [vmem:[%s1 + $0x70] sm:$0xff]
    %v100 = vld [vmem:[%s1 + $0x78] sm:$0xff]
    %v101 = vpack.c.bf16 %v86, %v85
    %v102 = vpack.c.bf16 %v88, %v87
    %v103 = vpack.c.bf16 %v90, %v89
    %v104 = vpack.c.bf16 %v92, %v91
    %v105 = vpack.c.bf16 %v94, %v93
    %v106 = vpack.c.bf16 %v96, %v95
    %v107 = vpack.c.bf16 %v98, %v97
    %v108 = vpack.c.bf16 %v100, %v99
    %v109 = vld [vmem:[%s2] sm:$0xff]
    %v110 = vld [vmem:[%s2 + $0x8] sm:$0xff]
    %v111 = vld [vmem:[%s2 + $0x10] sm:$0xff]
    %v112 = vld [vmem:[%s2 + $0x18] sm:$0xff]
    %v113 = vld [vmem:[%s2 + $0x20] sm:$0xff]
    %v114 = vld [vmem:[%s2 + $0x28] sm:$0xff]
    %v115 = vld [vmem:[%s2 + $0x30] sm:$0xff]
    %v116 = vld [vmem:[%s2 + $0x38] sm:$0xff]
    %v117 = vpack.c.bf16 %v110, %v109
    %v118 = vpack.c.bf16 %v112, %v111
    %v119 = vpack.c.bf16 %v114, %v113
    %v120 = vpack.c.bf16 %v116, %v115
    %v121 = vld [vmem:[%s3] sm:$0xff]
    %v122 = vld [vmem:[%s3 + $0x8] sm:$0xff]
    %v123 = vld [vmem:[%s3 + $0x10] sm:$0xff]
    %v124 = vld [vmem:[%s3 + $0x18] sm:$0xff]
    %v125 = vld [vmem:[%s3 + $0x20] sm:$0xff]
    %v126 = vld [vmem:[%s3 + $0x28] sm:$0xff]
    %v127 = vld [vmem:[%s3 + $0x30] sm:$0xff]
    %v128 = vld [vmem:[%s3 + $0x38] sm:$0xff]
    %v129 = vld [vmem:[%s3 + $0x40] sm:$0xff]
    %v130 = vld [vmem:[%s3 + $0x48] sm:$0xff]
    %v131 = vld [vmem:[%s3 + $0x50] sm:$0xff]
    %v132 = vld [vmem:[%s3 + $0x58] sm:$0xff]
    %v133 = vld [vmem:[%s3 + $0x60] sm:$0xff]
    %v134 = vld [vmem:[%s3 + $0x68] sm:$0xff]
    %v135 = vld [vmem:[%s3 + $0x70] sm:$0xff]
    %v136 = vld [vmem:[%s3 + $0x78] sm:$0xff]
    %v137 = vpack.c.bf16 %v122, %v121
    %v138 = vpack.c.bf16 %v124, %v123
    %v139 = vpack.c.bf16 %v126, %v125
    %v140 = vpack.c.bf16 %v128, %v127
    %v141 = vpack.c.bf16 %v130, %v129
    %v142 = vpack.c.bf16 %v132, %v131
    %v143 = vpack.c.bf16 %v134, %v133
    %v144 = vpack.c.bf16 %v136, %v135
    %145 = vmatprep.subr.bf16.mxu0 0
    %146 = vmatpush1.bf16.msra.mxu0 %v137
    %147 = vmatprep.subr.bf16.mxu0 0
    %148 = vmatpush1.bf16.msra.mxu0 %v138
    %149 = vmatprep.subr.bf16.mxu0 0
    %150 = vmatpush1.bf16.msra.mxu0 %v139
    %151 = vmatprep.subr.bf16.mxu0 0
    %152 = vmatpush1.bf16.msra.mxu0 %v140
    %153 = vmatprep.subr.bf16.mxu0 0
    %154 = vmatpush1.bf16.msra.mxu0 %v141
    %155 = vmatprep.subr.bf16.mxu0 0
    %156 = vmatpush1.bf16.msra.mxu0 %v142
    %157 = vmatprep.subr.bf16.mxu0 0
    %158 = vmatpush1.bf16.msra.mxu0 %v143
    %159 = vmatprep.subr.bf16.mxu0 0
    %160 = vmatpush1.bf16.msra.mxu0 %v144
    %161 = vmatprep.subr.bf16.mxu0 0
    %162 = vmatpush1.bf16.msra.mxu0 0
    %163 = vmatprep.subr.bf16.mxu0 0
    %164 = vmatpush1.bf16.msra.mxu0 0
    %165 = vmatprep.subr.bf16.mxu0 0
    %166 = vmatpush1.bf16.msra.mxu0 0
    %167 = vmatprep.subr.bf16.mxu0 0
    %168 = vmatpush1.bf16.msra.mxu0 0
    %169 = vmatprep.subr.bf16.mxu0 0
    %170 = vmatpush1.bf16.msra.mxu0 0
    %171 = vmatprep.subr.bf16.mxu0 0
    %172 = vmatpush1.bf16.msra.mxu0 0
    %173 = vmatprep.subr.bf16.mxu0 0
    %174 = vmatpush1.bf16.msra.mxu0 0
    %175 = vmatprep.subr.bf16.mxu0 0
    %176 = vmatpush1.bf16.msra.mxu0 0
    %177 = vmatprep.mubr.bf16.mxu0 0
    %178 = vmatmul.mubr.bf16.gmra.mrb[0].mxu0 %v117
    %v179 = vpop.f32.mrb[0].mxu0
    %v180 = vadd.f32 0.0, %v179
    %v181 = vpop.f32.mrb[0].mxu0
    %v182 = vpop.f32.mrb[0].mxu0
    %v183 = vadd.f32 0.0, %v182
    %v184 = vpop.f32.mrb[0].mxu0
    %185 = vmatprep.mubr.bf16.mxu0 0
    %186 = vmatmul.mubr.bf16.gmra.mrb[0].mxu0 %v118
    %v187 = vpop.f32.mrb[0].mxu0
    %v188 = vadd.f32 0.0, %v187
    %v189 = vpop.f32.mrb[0].mxu0
    %v190 = vpop.f32.mrb[0].mxu0
    %v191 = vadd.f32 0.0, %v190
    %v192 = vpop.f32.mrb[0].mxu0
    %193 = vmatprep.mubr.bf16.mxu0 0
    %194 = vmatmul.mubr.bf16.gmra.mrb[0].mxu0 %v119
    %v195 = vpop.f32.mrb[0].mxu0
    %v196 = vadd.f32 0.0, %v195
    %v197 = vpop.f32.mrb[0].mxu0
    %v198 = vpop.f32.mrb[0].mxu0
    %v199 = vadd.f32 0.0, %v198
    %v200 = vpop.f32.mrb[0].mxu0
    %201 = vmatprep.mubr.bf16.mxu0 0
    %202 = vmatmul.mubr.bf16.gmra.mrb[0].mxu0 %v120
    %v203 = vpop.f32.mrb[0].mxu0
    %v204 = vadd.f32 0.0, %v203
    %v205 = vpop.f32.mrb[0].mxu0
    %v206 = vpop.f32.mrb[0].mxu0
    %v207 = vadd.f32 0.0, %v206
    %v208 = vpop.f32.mrb[0].mxu0
    %209 = vdwg.mxu0
    %v210 = vld [vmem:[%s0] sm:$0xff]
    %v211 = vld [vmem:[%s0 + $0x8] sm:$0xff]
    %v212 = vld [vmem:[%s0 + $0x10] sm:$0xff]
    %v213 = vld [vmem:[%s0 + $0x18] sm:$0xff]
    %v214 = vld [vmem:[%s0 + $0x20] sm:$0xff]
    %v215 = vld [vmem:[%s0 + $0x28] sm:$0xff]
    %v216 = vld [vmem:[%s0 + $0x30] sm:$0xff]
    %v217 = vld [vmem:[%s0 + $0x38] sm:$0xff]
    %v218 = vld [vmem:[%s0 + $0x40] sm:$0xff]
    %v219 = vld [vmem:[%s0 + $0x48] sm:$0xff]
    %v220 = vld [vmem:[%s0 + $0x50] sm:$0xff]
    %v221 = vld [vmem:[%s0 + $0x58] sm:$0xff]
    %v222 = vld [vmem:[%s0 + $0x60] sm:$0xff]
    %v223 = vld [vmem:[%s0 + $0x68] sm:$0xff]
    %v224 = vld [vmem:[%s0 + $0x70] sm:$0xff]
    %v225 = vld [vmem:[%s0 + $0x78] sm:$0xff]
    %v226 = vpack.c.bf16 %v211, %v210
    %v227 = vpack.c.bf16 %v213, %v212
    %v228 = vpack.c.bf16 %v215, %v214
    %v229 = vpack.c.bf16 %v217, %v216
    %v230 = vpack.c.bf16 %v219, %v218
    %v231 = vpack.c.bf16 %v221, %v220
    %v232 = vpack.c.bf16 %v223, %v222
    %v233 = vpack.c.bf16 %v225, %v224
    %v234 = vpack.c.bf16 %v183, %v180
    %v235 = vpack.c.bf16 %v191, %v188
    %v236 = vpack.c.bf16 %v199, %v196
    %v237 = vpack.c.bf16 %v207, %v204
    %v238 = vld [vmem:[%s4] sm:$0x1]
    %v240 = vlaneseq
    %v241 = vshrl.u32 %v240, 7
    %v242 = vsub.s32 0, %v241
    %v243 = vrot.slane %v238, %v242
    %vm245 = vcmask 523264
    %v247 = vsel %vm245, %v226, 0
    %v250 = vsel %vm245, %v227, 0
    %v253 = vsel %vm245, %v228, 0
    %v256 = vsel %vm245, %v229, 0
    %v259 = vsel %vm245, %v230, 0
    %v262 = vsel %vm245, %v231, 0
    %v265 = vsel %vm245, %v232, 0
    %v268 = vsel %vm245, %v233, 0
    %270 = vmatprep.subr.bf16.mxu0 0
    %271 = vmatpush1.bf16.msra.mxu0 %v234
    %272 = vmatprep.subr.bf16.mxu0 0
    %273 = vmatpush1.bf16.msra.mxu0 %v235
    %274 = vmatprep.subr.bf16.mxu0 0
    %275 = vmatpush1.bf16.msra.mxu0 %v236
    %276 = vmatprep.subr.bf16.mxu0 0
    %277 = vmatpush1.bf16.msra.mxu0 %v237
    %278 = vmatprep.subr.bf16.mxu0 0
    %279 = vmatpush1.bf16.msra.mxu0 0
    %280 = vmatprep.subr.bf16.mxu0 0
    %281 = vmatpush1.bf16.msra.mxu0 0
    %282 = vmatprep.subr.bf16.mxu0 0
    %283 = vmatpush1.bf16.msra.mxu0 0
    %284 = vmatprep.subr.bf16.mxu0 0
    %285 = vmatpush1.bf16.msra.mxu0 0
    %286 = vmatprep.subr.bf16.mxu0 0
    %287 = vmatpush1.bf16.msra.mxu0 0
    %288 = vmatprep.subr.bf16.mxu0 0
    %289 = vmatpush1.bf16.msra.mxu0 0
    %290 = vmatprep.subr.bf16.mxu0 0
    %291 = vmatpush1.bf16.msra.mxu0 0
    %292 = vmatprep.subr.bf16.mxu0 0
    %293 = vmatpush1.bf16.msra.mxu0 0
    %294 = vmatprep.subr.bf16.mxu0 0
    %295 = vmatpush1.bf16.msra.mxu0 0
    %296 = vmatprep.subr.bf16.mxu0 0
    %297 = vmatpush1.bf16.msra.mxu0 0
    %298 = vmatprep.subr.bf16.mxu0 0
    %299 = vmatpush1.bf16.msra.mxu0 0
    %300 = vmatprep.subr.bf16.mxu0 0
    %301 = vmatpush1.bf16.msra.mxu0 0
    %302 = vmatprep.mubr.bf16.mxu0 0
    %303 = vmatmul.mubr.bf16.gmra.mrb[0].mxu0 %v247
    %v304 = vpop.f32.mrb[0].mxu0
    %v305 = vadd.f32 %v243, %v304
    %v306 = vpop.f32.mrb[0].mxu0
    %v307 = vpop.f32.mrb[0].mxu0
    %v308 = vadd.f32 %v243, %v307
    %v309 = vpop.f32.mrb[0].mxu0
    %310 = vmatprep.mubr.bf16.mxu0 0
    %311 = vmatmul.mubr.bf16.gmra.mrb[0].mxu0 %v250
    %v312 = vpop.f32.mrb[0].mxu0
    %v313 = vadd.f32 %v243, %v312
    %v314 = vpop.f32.mrb[0].mxu0
    %v315 = vpop.f32.mrb[0].mxu0
    %v316 = vadd.f32 %v243, %v315
    %v317 = vpop.f32.mrb[0].mxu0
    %318 = vmatprep.mubr.bf16.mxu0 0
    %319 = vmatmul.mubr.bf16.gmra.mrb[0].mxu0 %v253
    %v320 = vpop.f32.mrb[0].mxu0
    %v321 = vadd.f32 %v243, %v320
    %v322 = vpop.f32.mrb[0].mxu0
    %v323 = vpop.f32.mrb[0].mxu0
    %v324 = vadd.f32 %v243, %v323
    %v325 = vpop.f32.mrb[0].mxu0
    %326 = vmatprep.mubr.bf16.mxu0 0
    %327 = vmatmul.mubr.bf16.gmra.mrb[0].mxu0 %v256
    %v328 = vpop.f32.mrb[0].mxu0
    %v329 = vadd.f32 %v243, %v328
    %v330 = vpop.f32.mrb[0].mxu0
    %v331 = vpop.f32.mrb[0].mxu0
    %v332 = vadd.f32 %v243, %v331
    %v333 = vpop.f32.mrb[0].mxu0
    %334 = vmatprep.mubr.bf16.mxu0 0
    %335 = vmatmul.mubr.bf16.gmra.mrb[0].mxu0 %v259
    %v336 = vpop.f32.mrb[0].mxu0
    %v337 = vadd.f32 %v243, %v336
    %v338 = vpop.f32.mrb[0].mxu0
    %v339 = vpop.f32.mrb[0].mxu0
    %v340 = vadd.f32 %v243, %v339
    %v341 = vpop.f32.mrb[0].mxu0
    %342 = vmatprep.mubr.bf16.mxu0 0
    %343 = vmatmul.mubr.bf16.gmra.mrb[0].mxu0 %v262
    %v344 = vpop.f32.mrb[0].mxu0
    %v345 = vadd.f32 %v243, %v344
    %v346 = vpop.f32.mrb[0].mxu0
    %v347 = vpop.f32.mrb[0].mxu0
    %v348 = vadd.f32 %v243, %v347
    %v349 = vpop.f32.mrb[0].mxu0
    %350 = vmatprep.mubr.bf16.mxu0 0
    %351 = vmatmul.mubr.bf16.gmra.mrb[0].mxu0 %v265
    %v352 = vpop.f32.mrb[0].mxu0
    %v353 = vadd.f32 %v243, %v352
    %v354 = vpop.f32.mrb[0].mxu0
    %v355 = vpop.f32.mrb[0].mxu0
    %v356 = vadd.f32 %v243, %v355
    %v357 = vpop.f32.mrb[0].mxu0
    %358 = vmatprep.mubr.bf16.mxu0 0
    %359 = vmatmul.mubr.bf16.gmra.mrb[0].mxu0 %v268
    %v360 = vpop.f32.mrb[0].mxu0
    %v361 = vadd.f32 %v243, %v360
    %v362 = vpop.f32.mrb[0].mxu0
    %v363 = vpop.f32.mrb[0].mxu0
    %v364 = vadd.f32 %v243, %v363
    %v365 = vpop.f32.mrb[0].mxu0
    %366 = vdwg.mxu0
    %v367 = vmax.f32 %v305, 0.0
    %v368 = vmax.f32 %v308, 0.0
    %v369 = vmax.f32 %v313, 0.0
    %v370 = vmax.f32 %v316, 0.0
    %v371 = vmax.f32 %v321, 0.0
    %v372 = vmax.f32 %v324, 0.0
    %v373 = vmax.f32 %v329, 0.0
    %v374 = vmax.f32 %v332, 0.0
    %v375 = vmax.f32 %v337, 0.0
    %v376 = vmax.f32 %v340, 0.0
    %v377 = vmax.f32 %v345, 0.0
    %v378 = vmax.f32 %v348, 0.0
    %v379 = vmax.f32 %v353, 0.0
    %v380 = vmax.f32 %v356, 0.0
    %v381 = vmax.f32 %v361, 0.0
    %v382 = vmax.f32 %v364, 0.0
    %v383 = vpack.c.bf16 %v368, %v367
    %v384 = vpack.c.bf16 %v370, %v369
    %v385 = vpack.c.bf16 %v372, %v371
    %v386 = vpack.c.bf16 %v374, %v373
    %v387 = vpack.c.bf16 %v376, %v375
    %v388 = vpack.c.bf16 %v378, %v377
    %v389 = vpack.c.bf16 %v380, %v379
    %v390 = vpack.c.bf16 %v382, %v381
    %v391 = vld [vmem:[%s5] sm:$0xff]
    %v392 = vld [vmem:[%s5 + $0x8] sm:$0xff]
    %v393 = vld [vmem:[%s5 + $0x10] sm:$0xff]
    %v394 = vld [vmem:[%s5 + $0x18] sm:$0xff]
    %v395 = vld [vmem:[%s5 + $0x20] sm:$0xff]
    %v396 = vld [vmem:[%s5 + $0x28] sm:$0xff]
    %v397 = vld [vmem:[%s5 + $0x30] sm:$0xff]
    %v398 = vld [vmem:[%s5 + $0x38] sm:$0xff]
    %v399 = vld [vmem:[%s5 + $0x40] sm:$0xff]
    %v400 = vld [vmem:[%s5 + $0x48] sm:$0xff]
    %v401 = vld [vmem:[%s5 + $0x50] sm:$0xff]
    %v402 = vld [vmem:[%s5 + $0x58] sm:$0xff]
    %v403 = vld [vmem:[%s5 + $0x60] sm:$0xff]
    %v404 = vld [vmem:[%s5 + $0x68] sm:$0xff]
    %v405 = vld [vmem:[%s5 + $0x70] sm:$0xff]
    %v406 = vld [vmem:[%s5 + $0x78] sm:$0xff]
    %v407 = vpack.c.bf16 %v392, %v391
    %v408 = vpack.c.bf16 %v394, %v393
    %v409 = vpack.c.bf16 %v396, %v395
    %v410 = vpack.c.bf16 %v398, %v397
    %v411 = vpack.c.bf16 %v400, %v399
    %v412 = vpack.c.bf16 %v402, %v401
    %v413 = vpack.c.bf16 %v404, %v403
    %v414 = vpack.c.bf16 %v406, %v405
    %415 = vmatprep.subr.bf16.mxu0 0
    %416 = vmatpush1.bf16.msra.mxu0 %v407
    %417 = vmatprep.subr.bf16.mxu0 0
    %418 = vmatpush1.bf16.msra.mxu0 %v408
    %419 = vmatprep.subr.bf16.mxu0 0
    %420 = vmatpush1.bf16.msra.mxu0 %v409
    %421 = vmatprep.subr.bf16.mxu0 0
    %422 = vmatpush1.bf16.msra.mxu0 %v410
    %423 = vmatprep.subr.bf16.mxu0 0
    %424 = vmatpush1.bf16.msra.mxu0 %v411
    %425 = vmatprep.subr.bf16.mxu0 0
    %426 = vmatpush1.bf16.msra.mxu0 %v412
    %427 = vmatprep.subr.bf16.mxu0 0
    %428 = vmatpush1.bf16.msra.mxu0 %v413
    %429 = vmatprep.subr.bf16.mxu0 0
    %430 = vmatpush1.bf16.msra.mxu0 %v414
    %431 = vmatprep.subr.bf16.mxu0 0
    %432 = vmatpush1.bf16.msra.mxu0 0
    %433 = vmatprep.subr.bf16.mxu0 0
    %434 = vmatpush1.bf16.msra.mxu0 0
    %435 = vmatprep.subr.bf16.mxu0 0
    %436 = vmatpush1.bf16.msra.mxu0 0
    %437 = vmatprep.subr.bf16.mxu0 0
    %438 = vmatpush1.bf16.msra.mxu0 0
    %439 = vmatprep.subr.bf16.mxu0 0
    %440 = vmatpush1.bf16.msra.mxu0 0
    %441 = vmatprep.subr.bf16.mxu0 0
    %442 = vmatpush1.bf16.msra.mxu0 0
    %443 = vmatprep.subr.bf16.mxu0 0
    %444 = vmatpush1.bf16.msra.mxu0 0
    %445 = vmatprep.subr.bf16.mxu0 0
    %446 = vmatpush1.bf16.msra.mxu0 0
    %447 = vmatprep.mubr.bf16.mxu0 0
    %448 = vmatmul.mubr.bf16.gmra.mrb[0].mxu0 %v383
    %v449 = vpop.f32.mrb[0].mxu0
    %v450 = vadd.f32 0.0, %v449
    %v451 = vpop.f32.mrb[0].mxu0
    %v452 = vpop.f32.mrb[0].mxu0
    %v453 = vadd.f32 0.0, %v452
    %v454 = vpop.f32.mrb[0].mxu0
    %455 = vmatprep.mubr.bf16.mxu0 0
    %456 = vmatmul.mubr.bf16.gmra.mrb[0].mxu0 %v384
    %v457 = vpop.f32.mrb[0].mxu0
    %v458 = vadd.f32 0.0, %v457
    %v459 = vpop.f32.mrb[0].mxu0
    %v460 = vpop.f32.mrb[0].mxu0
    %v461 = vadd.f32 0.0, %v460
    %v462 = vpop.f32.mrb[0].mxu0
    %463 = vmatprep.mubr.bf16.mxu0 0
    %464 = vmatmul.mubr.bf16.gmra.mrb[0].mxu0 %v385
    %v465 = vpop.f32.mrb[0].mxu0
    %v466 = vadd.f32 0.0, %v465
    %v467 = vpop.f32.mrb[0].mxu0
    %v468 = vpop.f32.mrb[0].mxu0
    %v469 = vadd.f32 0.0, %v468
    %v470 = vpop.f32.mrb[0].mxu0
    %471 = vmatprep.mubr.bf16.mxu0 0
    %472 = vmatmul.mubr.bf16.gmra.mrb[0].mxu0 %v386
    %v473 = vpop.f32.mrb[0].mxu0
    %v474 = vadd.f32 0.0, %v473
    %v475 = vpop.f32.mrb[0].mxu0
    %v476 = vpop.f32.mrb[0].mxu0
    %v477 = vadd.f32 0.0, %v476
    %v478 = vpop.f32.mrb[0].mxu0
    %479 = vmatprep.mubr.bf16.mxu0 0
    %480 = vmatmul.mubr.bf16.gmra.mrb[0].mxu0 %v387
    %v481 = vpop.f32.mrb[0].mxu0
    %v482 = vadd.f32 0.0, %v481
    %v483 = vpop.f32.mrb[0].mxu0
    %v484 = vpop.f32.mrb[0].mxu0
    %v485 = vadd.f32 0.0, %v484
    %v486 = vpop.f32.mrb[0].mxu0
    %487 = vmatprep.mubr.bf16.mxu0 0
    %488 = vmatmul.mubr.bf16.gmra.mrb[0].mxu0 %v388
    %v489 = vpop.f32.mrb[0].mxu0
    %v490 = vadd.f32 0.0, %v489
    %v491 = vpop.f32.mrb[0].mxu0
    %v492 = vpop.f32.mrb[0].mxu0
    %v493 = vadd.f32 0.0, %v492
    %v494 = vpop.f32.mrb[0].mxu0
    %495 = vmatprep.mubr.bf16.mxu0 0
    %496 = vmatmul.mubr.bf16.gmra.mrb[0].mxu0 %v389
    %v497 = vpop.f32.mrb[0].mxu0
    %v498 = vadd.f32 0.0, %v497
    %v499 = vpop.f32.mrb[0].mxu0
    %v500 = vpop.f32.mrb[0].mxu0
    %v501 = vadd.f32 0.0, %v500
    %v502 = vpop.f32.mrb[0].mxu0
    %503 = vmatprep.mubr.bf16.mxu0 0
    %504 = vmatmul.mubr.bf16.gmra.mrb[0].mxu0 %v390
    %v505 = vpop.f32.mrb[0].mxu0
    %v506 = vadd.f32 0.0, %v505
    %v507 = vpop.f32.mrb[0].mxu0
    %v508 = vpop.f32.mrb[0].mxu0
    %v509 = vadd.f32 0.0, %v508
    %v510 = vpop.f32.mrb[0].mxu0
    %511 = vdwg.mxu0
    %v512 = vpack.c.bf16 %v453, %v450
    %v513 = vpack.c.bf16 %v461, %v458
    %v514 = vpack.c.bf16 %v469, %v466
    %v515 = vpack.c.bf16 %v477, %v474
    %v516 = vpack.c.bf16 %v485, %v482
    %v517 = vpack.c.bf16 %v493, %v490
    %v518 = vpack.c.bf16 %v501, %v498
    %v519 = vpack.c.bf16 %v509, %v506
    %v520 = vld [vmem:[%s6] sm:$0x1]
    %v522 = vlaneseq
    %v523 = vshrl.u32 %v522, 7
    %v524 = vsub.s32 0, %v523
    %v525 = vrot.slane %v520, %v524
    %527 = vmatprep.subr.bf16.mxu0 0
    %528 = vmatpush1.bf16.msra.mxu0 %v512
    %529 = vmatprep.subr.bf16.mxu0 0
    %530 = vmatpush1.bf16.msra.mxu0 %v513
    %531 = vmatprep.subr.bf16.mxu0 0
    %532 = vmatpush1.bf16.msra.mxu0 %v514
    %533 = vmatprep.subr.bf16.mxu0 0
    %534 = vmatpush1.bf16.msra.mxu0 %v515
    %535 = vmatprep.subr.bf16.mxu0 0
    %536 = vmatpush1.bf16.msra.mxu0 %v516
    %537 = vmatprep.subr.bf16.mxu0 0
    %538 = vmatpush1.bf16.msra.mxu0 %v517
    %539 = vmatprep.subr.bf16.mxu0 0
    %540 = vmatpush1.bf16.msra.mxu0 %v518
    %541 = vmatprep.subr.bf16.mxu0 0
    %542 = vmatpush1.bf16.msra.mxu0 %v519
    %543 = vmatprep.subr.bf16.mxu0 0
    %544 = vmatpush1.bf16.msra.mxu0 0
    %545 = vmatprep.subr.bf16.mxu0 0
    %546 = vmatpush1.bf16.msra.mxu0 0
    %547 = vmatprep.subr.bf16.mxu0 0
    %548 = vmatpush1.bf16.msra.mxu0 0
    %549 = vmatprep.subr.bf16.mxu0 0
    %550 = vmatpush1.bf16.msra.mxu0 0
    %551 = vmatprep.subr.bf16.mxu0 0
    %552 = vmatpush1.bf16.msra.mxu0 0
    %553 = vmatprep.subr.bf16.mxu0 0
    %554 = vmatpush1.bf16.msra.mxu0 0
    %555 = vmatprep.subr.bf16.mxu0 0
    %556 = vmatpush1.bf16.msra.mxu0 0
    %557 = vmatprep.subr.bf16.mxu0 0
    %558 = vmatpush1.bf16.msra.mxu0 0
    %559 = vmatprep.mubr.bf16.mxu0 0
    %560 = vmatmul.mubr.bf16.gmra.mrb[0].mxu0 %v101
    %v561 = vpop.f32.mrb[0].mxu0
    %v562 = vadd.f32 %v525, %v561
    %v563 = vpop.f32.mrb[0].mxu0
    %v564 = vpop.f32.mrb[0].mxu0
    %v565 = vadd.f32 %v525, %v564
    %v566 = vpop.f32.mrb[0].mxu0
    %567 = vmatprep.mubr.bf16.mxu0 0
    %568 = vmatmul.mubr.bf16.gmra.mrb[0].mxu0 %v102
    %v569 = vpop.f32.mrb[0].mxu0
    %v570 = vadd.f32 %v525, %v569
    %v571 = vpop.f32.mrb[0].mxu0
    %v572 = vpop.f32.mrb[0].mxu0
    %v573 = vadd.f32 %v525, %v572
    %v574 = vpop.f32.mrb[0].mxu0
    %575 = vmatprep.mubr.bf16.mxu0 0
    %576 = vmatmul.mubr.bf16.gmra.mrb[0].mxu0 %v103
    %v577 = vpop.f32.mrb[0].mxu0
    %v578 = vadd.f32 %v525, %v577
    %v579 = vpop.f32.mrb[0].mxu0
    %v580 = vpop.f32.mrb[0].mxu0
    %v581 = vadd.f32 %v525, %v580
    %v582 = vpop.f32.mrb[0].mxu0
    %583 = vmatprep.mubr.bf16.mxu0 0
    %584 = vmatmul.mubr.bf16.gmra.mrb[0].mxu0 %v104
    %v585 = vpop.f32.mrb[0].mxu0
    %v586 = vadd.f32 %v525, %v585
    %v587 = vpop.f32.mrb[0].mxu0
    %v588 = vpop.f32.mrb[0].mxu0
    %v589 = vadd.f32 %v525, %v588
    %v590 = vpop.f32.mrb[0].mxu0
    %591 = vmatprep.mubr.bf16.mxu0 0
    %592 = vmatmul.mubr.bf16.gmra.mrb[0].mxu0 %v105
    %v593 = vpop.f32.mrb[0].mxu0
    %v594 = vadd.f32 %v525, %v593
    %v595 = vpop.f32.mrb[0].mxu0
    %v596 = vpop.f32.mrb[0].mxu0
    %v597 = vadd.f32 %v525, %v596
    %v598 = vpop.f32.mrb[0].mxu0
    %599 = vmatprep.mubr.bf16.mxu0 0
    %600 = vmatmul.mubr.bf16.gmra.mrb[0].mxu0 %v106
    %v601 = vpop.f32.mrb[0].mxu0
    %v602 = vadd.f32 %v525, %v601
    %v603 = vpop.f32.mrb[0].mxu0
    %v604 = vpop.f32.mrb[0].mxu0
    %v605 = vadd.f32 %v525, %v604
    %v606 = vpop.f32.mrb[0].mxu0
    %607 = vmatprep.mubr.bf16.mxu0 0
    %608 = vmatmul.mubr.bf16.gmra.mrb[0].mxu0 %v107
    %v609 = vpop.f32.mrb[0].mxu0
    %v610 = vadd.f32 %v525, %v609
    %v611 = vpop.f32.mrb[0].mxu0
    %v612 = vpop.f32.mrb[0].mxu0
    %v613 = vadd.f32 %v525, %v612
    %v614 = vpop.f32.mrb[0].mxu0
    %615 = vmatprep.mubr.bf16.mxu0 0
    %616 = vmatmul.mubr.bf16.gmra.mrb[0].mxu0 %v108
    %v617 = vpop.f32.mrb[0].mxu0
    %v618 = vadd.f32 %v525, %v617
    %v619 = vpop.f32.mrb[0].mxu0
    %v620 = vpop.f32.mrb[0].mxu0
    %v621 = vadd.f32 %v525, %v620
    %v622 = vpop.f32.mrb[0].mxu0
    %623 = vdwg.mxu0
    %v624 = vmax.f32 %v562, 0.0
    %v625 = vmax.f32 %v565, 0.0
    %v626 = vmax.f32 %v570, 0.0
    %v627 = vmax.f32 %v573, 0.0
    %v628 = vmax.f32 %v578, 0.0
    %v629 = vmax.f32 %v581, 0.0
    %v630 = vmax.f32 %v586, 0.0
    %v631 = vmax.f32 %v589, 0.0
    %v632 = vmax.f32 %v594, 0.0
    %v633 = vmax.f32 %v597, 0.0
    %v634 = vmax.f32 %v602, 0.0
    %v635 = vmax.f32 %v605, 0.0
    %v636 = vmax.f32 %v610, 0.0
    %v637 = vmax.f32 %v613, 0.0
    %v638 = vmax.f32 %v618, 0.0
    %v639 = vmax.f32 %v621, 0.0
    %v640 = vpack.c.bf16 %v625, %v624
    %v641 = vpack.c.bf16 %v627, %v626
    %v642 = vpack.c.bf16 %v629, %v628
    %v643 = vpack.c.bf16 %v631, %v630
    %v644 = vpack.c.bf16 %v633, %v632
    %v645 = vpack.c.bf16 %v635, %v634
    %v646 = vpack.c.bf16 %v637, %v636
    %v647 = vpack.c.bf16 %v639, %v638
    %v648 = vld [vmem:[#allocation2] sm:$0xff]
    %v649 = vld [vmem:[#allocation2 + $0x8] sm:$0xff]
    %v650 = vld [vmem:[#allocation2 + $0x10] sm:$0xff]
    %v651 = vld [vmem:[#allocation2 + $0x18] sm:$0xff]
    %v652 = vld [vmem:[#allocation2 + $0x20] sm:$0xff]
    %v653 = vld [vmem:[#allocation2 + $0x28] sm:$0xff]
    %v654 = vld [vmem:[#allocation2 + $0x30] sm:$0xff]
    %v655 = vld [vmem:[#allocation2 + $0x38] sm:$0xff]
    %v656 = vld [vmem:[#allocation2 + $0x40] sm:$0xff]
    %v657 = vld [vmem:[#allocation2 + $0x48] sm:$0xff]
    %v658 = vld [vmem:[#allocation2 + $0x50] sm:$0xff]
    %v659 = vld [vmem:[#allocation2 + $0x58] sm:$0xff]
    %v660 = vld [vmem:[#allocation2 + $0x60] sm:$0xff]
    %v661 = vld [vmem:[#allocation2 + $0x68] sm:$0xff]
    %v662 = vld [vmem:[#allocation2 + $0x70] sm:$0xff]
    %v663 = vld [vmem:[#allocation2 + $0x78] sm:$0xff]
    %v664 = vpack.c.bf16 %v649, %v648
    %v665 = vpack.c.bf16 %v651, %v650
    %v666 = vpack.c.bf16 %v653, %v652
    %v667 = vpack.c.bf16 %v655, %v654
    %v668 = vpack.c.bf16 %v657, %v656
    %v669 = vpack.c.bf16 %v659, %v658
    %v670 = vpack.c.bf16 %v661, %v660
    %v671 = vpack.c.bf16 %v663, %v662
    %672 = vmatprep.subr.bf16.mxu0 0
    %673 = vmatpush1.bf16.msra.mxu0 %v664
    %674 = vmatprep.subr.bf16.mxu0 0
    %675 = vmatpush1.bf16.msra.mxu0 %v665
    %676 = vmatprep.subr.bf16.mxu0 0
    %677 = vmatpush1.bf16.msra.mxu0 %v666
    %678 = vmatprep.subr.bf16.mxu0 0
    %679 = vmatpush1.bf16.msra.mxu0 %v667
    %680 = vmatprep.subr.bf16.mxu0 0
    %681 = vmatpush1.bf16.msra.mxu0 %v668
    %682 = vmatprep.subr.bf16.mxu0 0
    %683 = vmatpush1.bf16.msra.mxu0 %v669
    %684 = vmatprep.subr.bf16.mxu0 0
    %685 = vmatpush1.bf16.msra.mxu0 %v670
    %686 = vmatprep.subr.bf16.mxu0 0
    %687 = vmatpush1.bf16.msra.mxu0 %v671
    %688 = vmatprep.subr.bf16.mxu0 0
    %689 = vmatpush1.bf16.msra.mxu0 0
    %690 = vmatprep.subr.bf16.mxu0 0
    %691 = vmatpush1.bf16.msra.mxu0 0
    %692 = vmatprep.subr.bf16.mxu0 0
    %693 = vmatpush1.bf16.msra.mxu0 0
    %694 = vmatprep.subr.bf16.mxu0 0
    %695 = vmatpush1.bf16.msra.mxu0 0
    %696 = vmatprep.subr.bf16.mxu0 0
    %697 = vmatpush1.bf16.msra.mxu0 0
    %698 = vmatprep.subr.bf16.mxu0 0
    %699 = vmatpush1.bf16.msra.mxu0 0
    %700 = vmatprep.subr.bf16.mxu0 0
    %701 = vmatpush1.bf16.msra.mxu0 0
    %702 = vmatprep.subr.bf16.mxu0 0
    %703 = vmatpush1.bf16.msra.mxu0 0
    %704 = vmatprep.mubr.bf16.mxu0 0
    %705 = vmatmul.mubr.bf16.gmra.mrb[0].mxu0 %v640
    %v706 = vpop.f32.mrb[0].mxu0
    %v707 = vadd.f32 0.0, %v706
    %v708 = vpop.f32.mrb[0].mxu0
    %v709 = vpop.f32.mrb[0].mxu0
    %v710 = vadd.f32 0.0, %v709
    %v711 = vpop.f32.mrb[0].mxu0
    %712 = vmatprep.mubr.bf16.mxu0 0
    %713 = vmatmul.mubr.bf16.gmra.mrb[0].mxu0 %v641
    %v714 = vpop.f32.mrb[0].mxu0
    %v715 = vadd.f32 0.0, %v714
    %v716 = vpop.f32.mrb[0].mxu0
    %v717 = vpop.f32.mrb[0].mxu0
    %v718 = vadd.f32 0.0, %v717
    %v719 = vpop.f32.mrb[0].mxu0
    %720 = vmatprep.mubr.bf16.mxu0 0
    %721 = vmatmul.mubr.bf16.gmra.mrb[0].mxu0 %v642
    %v722 = vpop.f32.mrb[0].mxu0
    %v723 = vadd.f32 0.0, %v722
    %v724 = vpop.f32.mrb[0].mxu0
    %v725 = vpop.f32.mrb[0].mxu0
    %v726 = vadd.f32 0.0, %v725
    %v727 = vpop.f32.mrb[0].mxu0
    %728 = vmatprep.mubr.bf16.mxu0 0
    %729 = vmatmul.mubr.bf16.gmra.mrb[0].mxu0 %v643
    %v730 = vpop.f32.mrb[0].mxu0
    %v731 = vadd.f32 0.0, %v730
    %v732 = vpop.f32.mrb[0].mxu0
    %v733 = vpop.f32.mrb[0].mxu0
    %v734 = vadd.f32 0.0, %v733
    %v735 = vpop.f32.mrb[0].mxu0
    %736 = vmatprep.mubr.bf16.mxu0 0
    %737 = vmatmul.mubr.bf16.gmra.mrb[0].mxu0 %v644
    %v738 = vpop.f32.mrb[0].mxu0
    %v739 = vadd.f32 0.0, %v738
    %v740 = vpop.f32.mrb[0].mxu0
    %v741 = vpop.f32.mrb[0].mxu0
    %v742 = vadd.f32 0.0, %v741
    %v743 = vpop.f32.mrb[0].mxu0
    %744 = vmatprep.mubr.bf16.mxu0 0
    %745 = vmatmul.mubr.bf16.gmra.mrb[0].mxu0 %v645
    %v746 = vpop.f32.mrb[0].mxu0
    %v747 = vadd.f32 0.0, %v746
    %v748 = vpop.f32.mrb[0].mxu0
    %v749 = vpop.f32.mrb[0].mxu0
    %v750 = vadd.f32 0.0, %v749
    %v751 = vpop.f32.mrb[0].mxu0
    %752 = vmatprep.mubr.bf16.mxu0 0
    %753 = vmatmul.mubr.bf16.gmra.mrb[0].mxu0 %v646
    %v754 = vpop.f32.mrb[0].mxu0
    %v755 = vadd.f32 0.0, %v754
    %v756 = vpop.f32.mrb[0].mxu0
    %v757 = vpop.f32.mrb[0].mxu0
    %v758 = vadd.f32 0.0, %v757
    %v759 = vpop.f32.mrb[0].mxu0
    %760 = vmatprep.mubr.bf16.mxu0 0
    %761 = vmatmul.mubr.bf16.gmra.mrb[0].mxu0 %v647
    %v762 = vpop.f32.mrb[0].mxu0
    %v763 = vadd.f32 0.0, %v762
    %v764 = vpop.f32.mrb[0].mxu0
    %v765 = vpop.f32.mrb[0].mxu0
    %v766 = vadd.f32 0.0, %v765
    %v767 = vpop.f32.mrb[0].mxu0
    %768 = vdwg.mxu0
    %v769 = vpack.c.bf16 %v710, %v707
    %v770 = vpack.c.bf16 %v718, %v715
    %v771 = vpack.c.bf16 %v726, %v723
    %v772 = vpack.c.bf16 %v734, %v731
    %v773 = vpack.c.bf16 %v742, %v739
    %v774 = vpack.c.bf16 %v750, %v747
    %v775 = vpack.c.bf16 %v758, %v755
    %v776 = vpack.c.bf16 %v766, %v763
    %v777 = vld [vmem:[%s8] sm:$0x1]
    %v779 = vlaneseq
    %v780 = vshrl.u32 %v779, 7
    %v781 = vsub.s32 0, %v780
    %v782 = vrot.slane %v777, %v781
    %784 = vmatprep.subr.bf16.mxu0 0
    %785 = vmatpush1.bf16.msra.mxu0 %v769
    %786 = vmatprep.subr.bf16.mxu0 0
    %787 = vmatpush1.bf16.msra.mxu0 %v770
    %788 = vmatprep.subr.bf16.mxu0 0
    %789 = vmatpush1.bf16.msra.mxu0 %v771
    %790 = vmatprep.subr.bf16.mxu0 0
    %791 = vmatpush1.bf16.msra.mxu0 %v772
    %792 = vmatprep.subr.bf16.mxu0 0
    %793 = vmatpush1.bf16.msra.mxu0 %v773
    %794 = vmatprep.subr.bf16.mxu0 0
    %795 = vmatpush1.bf16.msra.mxu0 %v774
    %796 = vmatprep.subr.bf16.mxu0 0
    %797 = vmatpush1.bf16.msra.mxu0 %v775
    %798 = vmatprep.subr.bf16.mxu0 0
    %799 = vmatpush1.bf16.msra.mxu0 %v776
    %800 = vmatprep.subr.bf16.mxu0 0
    %801 = vmatpush1.bf16.msra.mxu0 0
    %802 = vmatprep.subr.bf16.mxu0 0
    %803 = vmatpush1.bf16.msra.mxu0 0
    %804 = vmatprep.subr.bf16.mxu0 0
    %805 = vmatpush1.bf16.msra.mxu0 0
    %806 = vmatprep.subr.bf16.mxu0 0
    %807 = vmatpush1.bf16.msra.mxu0 0
    %808 = vmatprep.subr.bf16.mxu0 0
    %809 = vmatpush1.bf16.msra.mxu0 0
    %810 = vmatprep.subr.bf16.mxu0 0
    %811 = vmatpush1.bf16.msra.mxu0 0
    %812 = vmatprep.subr.bf16.mxu0 0
    %813 = vmatpush1.bf16.msra.mxu0 0
    %814 = vmatprep.subr.bf16.mxu0 0
    %815 = vmatpush1.bf16.msra.mxu0 0
    %816 = vmatprep.mubr.bf16.mxu0 0
    %817 = vmatmul.mubr.bf16.gmra.mrb[0].mxu0 %v101
    %v818 = vpop.f32.mrb[0].mxu0
    %v819 = vadd.f32 %v782, %v818
    %v820 = vpop.f32.mrb[0].mxu0
    %v821 = vpop.f32.mrb[0].mxu0
    %v822 = vadd.f32 %v782, %v821
    %v823 = vpop.f32.mrb[0].mxu0
    %824 = vmatprep.mubr.bf16.mxu0 0
    %825 = vmatmul.mubr.bf16.gmra.mrb[0].mxu0 %v102
    %v826 = vpop.f32.mrb[0].mxu0
    %v827 = vadd.f32 %v782, %v826
    %v828 = vpop.f32.mrb[0].mxu0
    %v829 = vpop.f32.mrb[0].mxu0
    %v830 = vadd.f32 %v782, %v829
    %v831 = vpop.f32.mrb[0].mxu0
    %832 = vmatprep.mubr.bf16.mxu0 0
    %833 = vmatmul.mubr.bf16.gmra.mrb[0].mxu0 %v103
    %v834 = vpop.f32.mrb[0].mxu0
    %v835 = vadd.f32 %v782, %v834
    %v836 = vpop.f32.mrb[0].mxu0
    %v837 = vpop.f32.mrb[0].mxu0
    %v838 = vadd.f32 %v782, %v837
    %v839 = vpop.f32.mrb[0].mxu0
    %840 = vmatprep.mubr.bf16.mxu0 0
    %841 = vmatmul.mubr.bf16.gmra.mrb[0].mxu0 %v104
    %v842 = vpop.f32.mrb[0].mxu0
    %v843 = vadd.f32 %v782, %v842
    %v844 = vpop.f32.mrb[0].mxu0
    %v845 = vpop.f32.mrb[0].mxu0
    %v846 = vadd.f32 %v782, %v845
    %v847 = vpop.f32.mrb[0].mxu0
    %848 = vmatprep.mubr.bf16.mxu0 0
    %849 = vmatmul.mubr.bf16.gmra.mrb[0].mxu0 %v105
    %v850 = vpop.f32.mrb[0].mxu0
    %v851 = vadd.f32 %v782, %v850
    %v852 = vpop.f32.mrb[0].mxu0
    %v853 = vpop.f32.mrb[0].mxu0
    %v854 = vadd.f32 %v782, %v853
    %v855 = vpop.f32.mrb[0].mxu0
    %856 = vmatprep.mubr.bf16.mxu0 0
    %857 = vmatmul.mubr.bf16.gmra.mrb[0].mxu0 %v106
    %v858 = vpop.f32.mrb[0].mxu0
    %v859 = vadd.f32 %v782, %v858
    %v860 = vpop.f32.mrb[0].mxu0
    %v861 = vpop.f32.mrb[0].mxu0
    %v862 = vadd.f32 %v782, %v861
    %v863 = vpop.f32.mrb[0].mxu0
    %864 = vmatprep.mubr.bf16.mxu0 0
    %865 = vmatmul.mubr.bf16.gmra.mrb[0].mxu0 %v107
    %v866 = vpop.f32.mrb[0].mxu0
    %v867 = vadd.f32 %v782, %v866
    %v868 = vpop.f32.mrb[0].mxu0
    %v869 = vpop.f32.mrb[0].mxu0
    %v870 = vadd.f32 %v782, %v869
    %v871 = vpop.f32.mrb[0].mxu0
    %872 = vmatprep.mubr.bf16.mxu0 0
    %873 = vmatmul.mubr.bf16.gmra.mrb[0].mxu0 %v108
    %v874 = vpop.f32.mrb[0].mxu0
    %v875 = vadd.f32 %v782, %v874
    %v876 = vpop.f32.mrb[0].mxu0
    %v877 = vpop.f32.mrb[0].mxu0
    %v878 = vadd.f32 %v782, %v877
    %v879 = vpop.f32.mrb[0].mxu0
    %880 = vdwg.mxu0
    %881 = vst [vmem:[%s13] sm:$0xff] %v819
    %882 = vst [vmem:[%s13 + $0x8] sm:$0xff] %v822
    %883 = vst [vmem:[%s13 + $0x10] sm:$0xff] %v827
    %884 = vst [vmem:[%s13 + $0x18] sm:$0xff] %v830
    %885 = vst [vmem:[%s13 + $0x20] sm:$0xff] %v835
    %886 = vst [vmem:[%s13 + $0x28] sm:$0xff] %v838
    %887 = vst [vmem:[%s13 + $0x30] sm:$0xff] %v843
    %888 = vst [vmem:[%s13 + $0x38] sm:$0xff] %v846
    %889 = vst [vmem:[%s13 + $0x40] sm:$0xff] %v851
    %890 = vst [vmem:[%s13 + $0x48] sm:$0xff] %v854
    %891 = vst [vmem:[%s13 + $0x50] sm:$0xff] %v859
    %892 = vst [vmem:[%s13 + $0x58] sm:$0xff] %v862
    %893 = vst [vmem:[%s13 + $0x60] sm:$0xff] %v867
    %894 = vst [vmem:[%s13 + $0x68] sm:$0xff] %v870
    %895 = vst [vmem:[%s13 + $0x70] sm:$0xff] %v875
    %896 = vst [vmem:[%s13 + $0x78] sm:$0xff] %v878
    %v897 = vpack.c.bf16 %v822, %v819
    %v898 = vpack.c.bf16 %v830, %v827
    %v899 = vpack.c.bf16 %v838, %v835
    %v900 = vpack.c.bf16 %v846, %v843
    %v901 = vld [vmem:[#allocation4] sm:$0xff]
    %v902 = vld [vmem:[#allocation4 + $0x8] sm:$0xff]
    %v903 = vld [vmem:[#allocation4 + $0x10] sm:$0xff]
    %v904 = vld [vmem:[#allocation4 + $0x18] sm:$0xff]
    %v905 = vld [vmem:[#allocation4 + $0x20] sm:$0xff]
    %v906 = vld [vmem:[#allocation4 + $0x28] sm:$0xff]
    %v907 = vld [vmem:[#allocation4 + $0x30] sm:$0xff]
    %v908 = vld [vmem:[#allocation4 + $0x38] sm:$0xff]
    %v909 = vld [vmem:[#allocation4 + $0x40] sm:$0xff]
    %v910 = vld [vmem:[#allocation4 + $0x48] sm:$0xff]
    %v911 = vld [vmem:[#allocation4 + $0x50] sm:$0xff]
    %v912 = vld [vmem:[#allocation4 + $0x58] sm:$0xff]
    %v913 = vld [vmem:[#allocation4 + $0x60] sm:$0xff]
    %v914 = vld [vmem:[#allocation4 + $0x68] sm:$0xff]
    %v915 = vld [vmem:[#allocation4 + $0x70] sm:$0xff]
    %v916 = vld [vmem:[#allocation4 + $0x78] sm:$0xff]
    %v917 = vpack.c.bf16 %v902, %v901
    %v918 = vpack.c.bf16 %v904, %v903
    %v919 = vpack.c.bf16 %v906, %v905
    %v920 = vpack.c.bf16 %v908, %v907
    %v921 = vpack.c.bf16 %v910, %v909
    %v922 = vpack.c.bf16 %v912, %v911
    %v923 = vpack.c.bf16 %v914, %v913
    %v924 = vpack.c.bf16 %v916, %v915
    %v925 = vpack.c.bf16 %v854, %v851
    %v926 = vpack.c.bf16 %v862, %v859
    %v927 = vpack.c.bf16 %v870, %v867
    %v928 = vpack.c.bf16 %v878, %v875
    %v929 = vld [vmem:[#allocation6] sm:$0xff]
    %v930 = vld [vmem:[#allocation6 + $0x8] sm:$0xff]
    %v931 = vld [vmem:[#allocation6 + $0x10] sm:$0xff]
    %v932 = vld [vmem:[#allocation6 + $0x18] sm:$0xff]
    %v933 = vld [vmem:[#allocation6 + $0x20] sm:$0xff]
    %v934 = vld [vmem:[#allocation6 + $0x28] sm:$0xff]
    %v935 = vld [vmem:[#allocation6 + $0x30] sm:$0xff]
    %v936 = vld [vmem:[#allocation6 + $0x38] sm:$0xff]
    %v937 = vld [vmem:[#allocation6 + $0x40] sm:$0xff]
    %v938 = vld [vmem:[#allocation6 + $0x48] sm:$0xff]
    %v939 = vld [vmem:[#allocation6 + $0x50] sm:$0xff]
    %v940 = vld [vmem:[#allocation6 + $0x58] sm:$0xff]
    %v941 = vld [vmem:[#allocation6 + $0x60] sm:$0xff]
    %v942 = vld [vmem:[#allocation6 + $0x68] sm:$0xff]
    %v943 = vld [vmem:[#allocation6 + $0x70] sm:$0xff]
    %v944 = vld [vmem:[#allocation6 + $0x78] sm:$0xff]
    %v945 = vpack.c.bf16 %v930, %v929
    %v946 = vpack.c.bf16 %v932, %v931
    %v947 = vpack.c.bf16 %v934, %v933
    %v948 = vpack.c.bf16 %v936, %v935
    %v949 = vpack.c.bf16 %v938, %v937
    %v950 = vpack.c.bf16 %v940, %v939
    %v951 = vpack.c.bf16 %v942, %v941
    %v952 = vpack.c.bf16 %v944, %v943
    %953 = vmatprep.subr.bf16.mxu0 0
    %954 = vmatpush1.bf16.msra.mxu0 %v945
    %955 = vmatprep.subr.bf16.mxu0 0
    %956 = vmatpush1.bf16.msra.mxu0 %v946
    %957 = vmatprep.subr.bf16.mxu0 0
    %958 = vmatpush1.bf16.msra.mxu0 %v947
    %959 = vmatprep.subr.bf16.mxu0 0
    %960 = vmatpush1.bf16.msra.mxu0 %v948
    %961 = vmatprep.subr.bf16.mxu0 0
    %962 = vmatpush1.bf16.msra.mxu0 %v949
    %963 = vmatprep.subr.bf16.mxu0 0
    %964 = vmatpush1.bf16.msra.mxu0 %v950
    %965 = vmatprep.subr.bf16.mxu0 0
    %966 = vmatpush1.bf16.msra.mxu0 %v951
    %967 = vmatprep.subr.bf16.mxu0 0
    %968 = vmatpush1.bf16.msra.mxu0 %v952
    %969 = vmatprep.subr.bf16.mxu0 0
    %970 = vmatpush1.bf16.msra.mxu0 0
    %971 = vmatprep.subr.bf16.mxu0 0
    %972 = vmatpush1.bf16.msra.mxu0 0
    %973 = vmatprep.subr.bf16.mxu0 0
    %974 = vmatpush1.bf16.msra.mxu0 0
    %975 = vmatprep.subr.bf16.mxu0 0
    %976 = vmatpush1.bf16.msra.mxu0 0
    %977 = vmatprep.subr.bf16.mxu0 0
    %978 = vmatpush1.bf16.msra.mxu0 0
    %979 = vmatprep.subr.bf16.mxu0 0
    %980 = vmatpush1.bf16.msra.mxu0 0
    %981 = vmatprep.subr.bf16.mxu0 0
    %982 = vmatpush1.bf16.msra.mxu0 0
    %983 = vmatprep.subr.bf16.mxu0 0
    %984 = vmatpush1.bf16.msra.mxu0 0
    %985 = vmatprep.mubr.bf16.mxu0 0
    %986 = vmatmul.mubr.bf16.gmra.mrb[0].mxu0 %v925
    %v987 = vpop.f32.mrb[0].mxu0
    %v988 = vadd.f32 0.0, %v987
    %v989 = vpop.f32.mrb[0].mxu0
    %v990 = vpop.f32.mrb[0].mxu0
    %v991 = vadd.f32 0.0, %v990
    %v992 = vpop.f32.mrb[0].mxu0
    %993 = vmatprep.mubr.bf16.mxu0 0
    %994 = vmatmul.mubr.bf16.gmra.mrb[0].mxu0 %v926
    %v995 = vpop.f32.mrb[0].mxu0
    %v996 = vadd.f32 0.0, %v995
    %v997 = vpop.f32.mrb[0].mxu0
    %v998 = vpop.f32.mrb[0].mxu0
    %v999 = vadd.f32 0.0, %v998
    %v1000 = vpop.f32.mrb[0].mxu0
    %1001 = vmatprep.mubr.bf16.mxu0 0
    %1002 = vmatmul.mubr.bf16.gmra.mrb[0].mxu0 %v927
    %v1003 = vpop.f32.mrb[0].mxu0
    %v1004 = vadd.f32 0.0, %v1003
    %v1005 = vpop.f32.mrb[0].mxu0
    %v1006 = vpop.f32.mrb[0].mxu0
    %v1007 = vadd.f32 0.0, %v1006
    %v1008 = vpop.f32.mrb[0].mxu0
    %1009 = vmatprep.mubr.bf16.mxu0 0
    %1010 = vmatmul.mubr.bf16.gmra.mrb[0].mxu0 %v928
    %v1011 = vpop.f32.mrb[0].mxu0
    %v1012 = vadd.f32 0.0, %v1011
    %v1013 = vpop.f32.mrb[0].mxu0
    %v1014 = vpop.f32.mrb[0].mxu0
    %v1015 = vadd.f32 0.0, %v1014
    %v1016 = vpop.f32.mrb[0].mxu0
    %1017 = vdwg.mxu0
    %1018 = vmatprep.subr.bf16.mxu0 0
    %1019 = vmatpush1.bf16.msra.mxu0 %v917
    %1020 = vmatprep.subr.bf16.mxu0 0
    %1021 = vmatpush1.bf16.msra.mxu0 %v918
    %1022 = vmatprep.subr.bf16.mxu0 0
    %1023 = vmatpush1.bf16.msra.mxu0 %v919
    %1024 = vmatprep.subr.bf16.mxu0 0
    %1025 = vmatpush1.bf16.msra.mxu0 %v920
    %1026 = vmatprep.subr.bf16.mxu0 0
    %1027 = vmatpush1.bf16.msra.mxu0 %v921
    %1028 = vmatprep.subr.bf16.mxu0 0
    %1029 = vmatpush1.bf16.msra.mxu0 %v922
    %1030 = vmatprep.subr.bf16.mxu0 0
    %1031 = vmatpush1.bf16.msra.mxu0 %v923
    %1032 = vmatprep.subr.bf16.mxu0 0
    %1033 = vmatpush1.bf16.msra.mxu0 %v924
    %1034 = vmatprep.subr.bf16.mxu0 0
    %1035 = vmatpush1.bf16.msra.mxu0 0
    %1036 = vmatprep.subr.bf16.mxu0 0
    %1037 = vmatpush1.bf16.msra.mxu0 0
    %1038 = vmatprep.subr.bf16.mxu0 0
    %1039 = vmatpush1.bf16.msra.mxu0 0
    %1040 = vmatprep.subr.bf16.mxu0 0
    %1041 = vmatpush1.bf16.msra.mxu0 0
    %1042 = vmatprep.subr.bf16.mxu0 0
    %1043 = vmatpush1.bf16.msra.mxu0 0
    %1044 = vmatprep.subr.bf16.mxu0 0
    %1045 = vmatpush1.bf16.msra.mxu0 0
    %1046 = vmatprep.subr.bf16.mxu0 0
    %1047 = vmatpush1.bf16.msra.mxu0 0
    %1048 = vmatprep.subr.bf16.mxu0 0
    %1049 = vmatpush1.bf16.msra.mxu0 0
    %1050 = vmatprep.mubr.bf16.mxu0 0
    %1051 = vmatmul.mubr.bf16.gmra.mrb[0].mxu0 %v897
    %v1052 = vpop.f32.mrb[0].mxu0
    %v1053 = vadd.f32 %v988, %v1052
    %v1054 = vpop.f32.mrb[0].mxu0
    %v1055 = vpop.f32.mrb[0].mxu0
    %v1056 = vadd.f32 %v991, %v1055
    %v1057 = vpop.f32.mrb[0].mxu0
    %1058 = vmatprep.mubr.bf16.mxu0 0
    %1059 = vmatmul.mubr.bf16.gmra.mrb[0].mxu0 %v898
    %v1060 = vpop.f32.mrb[0].mxu0
    %v1061 = vadd.f32 %v996, %v1060
    %v1062 = vpop.f32.mrb[0].mxu0
    %v1063 = vpop.f32.mrb[0].mxu0
    %v1064 = vadd.f32 %v999, %v1063
    %v1065 = vpop.f32.mrb[0].mxu0
    %1066 = vmatprep.mubr.bf16.mxu0 0
    %1067 = vmatmul.mubr.bf16.gmra.mrb[0].mxu0 %v899
    %v1068 = vpop.f32.mrb[0].mxu0
    %v1069 = vadd.f32 %v1004, %v1068
    %v1070 = vpop.f32.mrb[0].mxu0
    %v1071 = vpop.f32.mrb[0].mxu0
    %v1072 = vadd.f32 %v1007, %v1071
    %v1073 = vpop.f32.mrb[0].mxu0
    %1074 = vmatprep.mubr.bf16.mxu0 0
    %1075 = vmatmul.mubr.bf16.gmra.mrb[0].mxu0 %v900
    %v1076 = vpop.f32.mrb[0].mxu0
    %v1077 = vadd.f32 %v1012, %v1076
    %v1078 = vpop.f32.mrb[0].mxu0
    %v1079 = vpop.f32.mrb[0].mxu0
    %v1080 = vadd.f32 %v1015, %v1079
    %v1081 = vpop.f32.mrb[0].mxu0
    %1082 = vdwg.mxu0
    %v1083 = vld [vmem:[%s11] sm:$0x1]
    %v1085 = vlaneseq
    %v1086 = vshrl.u32 %v1085, 7
    %v1087 = vsub.s32 0, %v1086
    %v1088 = vrot.slane %v1083, %v1087
    %v1090 = vadd.f32 %v1053, %v1088
    %v1091 = vadd.f32 %v1056, %v1088
    %v1092 = vadd.f32 %v1061, %v1088
    %v1093 = vadd.f32 %v1064, %v1088
    %v1094 = vadd.f32 %v1069, %v1088
    %v1095 = vadd.f32 %v1072, %v1088
    %v1096 = vadd.f32 %v1077, %v1088
    %v1097 = vadd.f32 %v1080, %v1088
    %v1098 = vlaneseq
    %v1099 = vand.u32 %v1098, 127
    %vm1100 = vcmp.lt.s32.totalorder %v1099, 8
    %v1101 = vsel %vm1100, %v1090, -1e+30
    %v1102 = vsel %vm1100, %v1091, -1e+30
    %v1103 = vsel %vm1100, %v1092, -1e+30
    %v1104 = vsel %vm1100, %v1093, -1e+30
    %v1105 = vsel %vm1100, %v1094, -1e+30
    %v1106 = vsel %vm1100, %v1095, -1e+30
    %v1107 = vsel %vm1100, %v1096, -1e+30
    %v1108 = vsel %vm1100, %v1097, -1e+30
    %1109 = vmax.xlane.f32.xlu0 %v1101
    %v1110 = vpop.xlane.xlu0 %1109
    %1111 = vmax.xlane.f32.xlu0 %v1102
    %v1112 = vpop.xlane.xlu0 %1111
    %1113 = vmax.xlane.f32.xlu0 %v1103
    %v1114 = vpop.xlane.xlu0 %1113
    %1115 = vmax.xlane.f32.xlu0 %v1104
    %v1116 = vpop.xlane.xlu0 %1115
    %1117 = vmax.xlane.f32.xlu0 %v1105
    %v1118 = vpop.xlane.xlu0 %1117
    %1119 = vmax.xlane.f32.xlu0 %v1106
    %v1120 = vpop.xlane.xlu0 %1119
    %1121 = vmax.xlane.f32.xlu0 %v1107
    %v1122 = vpop.xlane.xlu0 %1121
    %1123 = vmax.xlane.f32.xlu0 %v1108
    %v1124 = vpop.xlane.xlu0 %1123
    %v1125 = vsub.f32 %v1101, %v1110
    %v1126 = vsub.f32 %v1102, %v1112
    %v1127 = vsub.f32 %v1103, %v1114
    %v1128 = vsub.f32 %v1104, %v1116
    %v1129 = vsub.f32 %v1105, %v1118
    %v1130 = vsub.f32 %v1106, %v1120
    %v1131 = vsub.f32 %v1107, %v1122
    %v1132 = vsub.f32 %v1108, %v1124
    %v1133 = vmul.f32 %v1125, 1.442695
    %v1134 = vpow.pop %v1133
    %v1135 = vmul.f32 %v1126, 1.442695
    %v1136 = vpow.pop %v1135
    %v1137 = vmul.f32 %v1127, 1.442695
    %v1138 = vpow.pop %v1137
    %v1139 = vmul.f32 %v1128, 1.442695
    %v1140 = vpow.pop %v1139
    %v1141 = vmul.f32 %v1129, 1.442695
    %v1142 = vpow.pop %v1141
    %v1143 = vmul.f32 %v1130, 1.442695
    %v1144 = vpow.pop %v1143
    %v1145 = vmul.f32 %v1131, 1.442695
    %v1146 = vpow.pop %v1145
    %v1147 = vmul.f32 %v1132, 1.442695
    %v1148 = vpow.pop %v1147
    %v1149 = vsel %vm1100, %v1134, 0.0
    %v1150 = vsel %vm1100, %v1136, 0.0
    %v1151 = vsel %vm1100, %v1138, 0.0
    %v1152 = vsel %vm1100, %v1140, 0.0
    %v1153 = vsel %vm1100, %v1142, 0.0
    %v1154 = vsel %vm1100, %v1144, 0.0
    %v1155 = vsel %vm1100, %v1146, 0.0
    %v1156 = vsel %vm1100, %v1148, 0.0
    %1157 = vadd.xlane.f32.xlu0 %v1149
    %v1158 = vpop.xlane.xlu0 %1157
    %1159 = vadd.xlane.f32.xlu0 %v1150
    %v1160 = vpop.xlane.xlu0 %1159
    %1161 = vadd.xlane.f32.xlu0 %v1151
    %v1162 = vpop.xlane.xlu0 %1161
    %1163 = vadd.xlane.f32.xlu0 %v1152
    %v1164 = vpop.xlane.xlu0 %1163
    %1165 = vadd.xlane.f32.xlu0 %v1153
    %v1166 = vpop.xlane.xlu0 %1165
    %1167 = vadd.xlane.f32.xlu0 %v1154
    %v1168 = vpop.xlane.xlu0 %1167
    %1169 = vadd.xlane.f32.xlu0 %v1155
    %v1170 = vpop.xlane.xlu0 %1169
    %1171 = vadd.xlane.f32.xlu0 %v1156
    %v1172 = vpop.xlane.xlu0 %1171
    %v1173 = vlog2.pop %v1158
    %v1174 = vmul.f32 %v1173, 0.6931472
    %v1175 = vlog2.pop %v1160
    %v1176 = vmul.f32 %v1175, 0.6931472
    %v1177 = vlog2.pop %v1162
    %v1178 = vmul.f32 %v1177, 0.6931472
    %v1179 = vlog2.pop %v1164
    %v1180 = vmul.f32 %v1179, 0.6931472
    %v1181 = vlog2.pop %v1166
    %v1182 = vmul.f32 %v1181, 0.6931472
    %v1183 = vlog2.pop %v1168
    %v1184 = vmul.f32 %v1183, 0.6931472
    %v1185 = vlog2.pop %v1170
    %v1186 = vmul.f32 %v1185, 0.6931472
    %v1187 = vlog2.pop %v1172
    %v1188 = vmul.f32 %v1187, 0.6931472
    %v1189 = vsub.f32 %v1125, %v1174
    %v1190 = vsub.f32 %v1126, %v1176
    %v1191 = vsub.f32 %v1127, %v1178
    %v1192 = vsub.f32 %v1128, %v1180
    %v1193 = vsub.f32 %v1129, %v1182
    %v1194 = vsub.f32 %v1130, %v1184
    %v1195 = vsub.f32 %v1131, %v1186
    %v1196 = vsub.f32 %v1132, %v1188
    %v1197 = vsel %vm1100, %v1189, 0.0
    %v1198 = vsel %vm1100, %v1190, 0.0
    %v1199 = vsel %vm1100, %v1191, 0.0
    %v1200 = vsel %vm1100, %v1192, 0.0
    %v1201 = vsel %vm1100, %v1193, 0.0
    %v1202 = vsel %vm1100, %v1194, 0.0
    %v1203 = vsel %vm1100, %v1195, 0.0
    %v1204 = vsel %vm1100, %v1196, 0.0
    %1205 = vst [vmem:[%s12] sm:$0xff] %v1197
    %1206 = vst [vmem:[%s12 + $0x8] sm:$0xff] %v1198
    %1207 = vst [vmem:[%s12 + $0x10] sm:$0xff] %v1199
    %1208 = vst [vmem:[%s12 + $0x18] sm:$0xff] %v1200
    %1209 = vst [vmem:[%s12 + $0x20] sm:$0xff] %v1201
    %1210 = vst [vmem:[%s12 + $0x28] sm:$0xff] %v1202
    %1211 = vst [vmem:[%s12 + $0x30] sm:$0xff] %v1203
    %1212 = vst [vmem:[%s12 + $0x38] sm:$0xff] %v1204
    // Predicated region
    $region62: #{our_model_share_forward.1} parent=1 // pred_check
      _
    $region63: #{our_model_share_forward.1} parent=1 // pred_check_branch
      %1214 = sbr.rel (0) target = $region65
    $region64: #{our_model_share_forward.1} parent=1 // pred_region
      _
    $region65: #{our_model_share_forward.1} parent=1 // pred_fallthru
      _
    // Predicated region
    $region66: #{our_model_share_forward.1} parent=1 // pred_check
      _
    $region67: #{our_model_share_forward.1} parent=1 // pred_check_branch
      %1216 = sbr.rel (0) target = $region69
    $region68: #{our_model_share_forward.1} parent=1 // pred_region
      _
    $region69: #{our_model_share_forward.1} parent=1 // pred_fallthru
      _
    // Predicated region
    $region70: #{our_model_share_forward.1} parent=1 // pred_check
      _
    $region71: #{our_model_share_forward.1} parent=1 // pred_check_branch
      %1218 = sbr.rel (0) target = $region73
    $region72: #{our_model_share_forward.1} parent=1 // pred_region
      _
    $region73: #{our_model_share_forward.1} parent=1 // pred_fallthru
      _
    // Predicated region
    $region74: #{our_model_share_forward.1} parent=1 // pred_check
      _
    $region75: #{our_model_share_forward.1} parent=1 // pred_check_branch
      %1220 = sbr.rel (0) target = $region77
    $region76: #{our_model_share_forward.1} parent=1 // pred_region
      _
    $region77: #{our_model_share_forward.1} parent=1 // pred_fallthru
      _
    %1221 = vsyncpa [#allocation3], 1
    %1222 = vsyncpa [#allocation5], 1

</llo_original>
